<compile_context>
chip_gen: v7x
topology: tpu7x:2x2x1
jax: 0.10.0
libtpu: 0.0.40
codegen_flags: <defaults>
</compile_context>

<pallas_src>
import functools

import jax
import jax.numpy as jnp
from jax.experimental import pallas as pl
from jax.experimental.pallas import tpu as pltpu


def _infini_attention_kernel(q_ref, k_ref, v_ref, mem_ref, norm_ref, wo_ref,
                             gate_ref, o_ref, m_sc, l_sc, acc_sc,
                             *, num_heads, head_dim):
    ki = pl.program_id(2)
    nk = pl.num_programs(2)
    hd = head_dim

    # ---------------- per-q-tile init (first k tile only) ----------------
    @pl.when(ki == 0)
    def _init():
        m_sc[...] = jnp.full(m_sc.shape, -jnp.inf, jnp.float32)
        l_sc[...] = jnp.zeros(l_sc.shape, jnp.float32)
        acc_sc[...] = jnp.zeros(acc_sc.shape, jnp.float32)

    q = q_ref[0]          # (TQ, H) bf16, rotated (unscaled — elu path needs it)
    k = k_ref[0]          # (TK, H) bf16, rotated, pre-scaled by 1/sqrt(hd)
    v = v_ref[0]          # (TK, H) bf16

    # Static head loop; heads are contiguous lane groups of width hd.
    for h in range(num_heads):
        lo = h * hd
        qh = q[:, lo:lo + hd]
        kh = k[:, lo:lo + hd]
        vh = v[:, lo:lo + hd]

        # --- streaming (online-softmax) attention ---
        s = jnp.einsum('qd,kd->qk', qh, kh,
                       preferred_element_type=jnp.float32)        # (TQ, TK)
        m_prev = m_sc[:, h:h + 1]                                  # (TQ, 1)
        l_prev = l_sc[:, h:h + 1]
        m_new = jnp.maximum(m_prev, jnp.max(s, axis=-1, keepdims=True))
        alpha = jnp.exp(m_prev - m_new)
        p = jnp.exp(s - m_new)
        l_sc[:, h:h + 1] = alpha * l_prev + jnp.sum(p, axis=-1, keepdims=True)
        m_sc[:, h:h + 1] = m_new
        pv = jnp.einsum('qk,kd->qd', p.astype(jnp.bfloat16), vh,
                        preferred_element_type=jnp.float32)        # (TQ, hd)
        acc_sc[:, lo:lo + hd] = alpha * acc_sc[:, lo:lo + hd] + pv

    # -------- finalize: memory retrieval + gate blend + fused o_proj --------
    @pl.when(ki == nk - 1)
    def _finalize():
        gate = gate_ref[...]                                       # (1, H) sigmoid(gate), lane-replicated
        mem = mem_ref[0]                                           # (hd, H) bf16  (per-head hd x hd blocks)
        norm = norm_ref[0]                                         # (1, H)  f32
        qf = q_ref[0].astype(jnp.float32)
        qa = jnp.where(qf > 0.0, qf + 1.0, jnp.exp(qf))            # elu(q) + 1
        qa_bf = qa.astype(jnp.bfloat16)
        for h in range(num_heads):
            lo = h * hd
            # memory numerator: q_act @ M_h   (bf16 MXU, f32 accumulate)
            mem_num = jnp.dot(qa_bf[:, lo:lo + hd], mem[:, lo:lo + hd],
                              preferred_element_type=jnp.float32)  # (TQ, hd)
            # memory denominator: q_act . norm_h  (once per q tile → exact)
            den = jnp.sum(qa[:, lo:lo + hd] * norm[:, lo:lo + hd],
                          axis=-1, keepdims=True)                  # (TQ, 1)
            attn_h = acc_sc[:, lo:lo + hd] / l_sc[:, h:h + 1]      # exact divide
            g = gate[:, lo:lo + hd]
            acc_sc[:, lo:lo + hd] = g * (mem_num / den) + (1.0 - g) * attn_h
        out = jnp.dot(acc_sc[...].astype(jnp.bfloat16), wo_ref[...],
                      preferred_element_type=jnp.float32)          # one K=H matmul
        o_ref[0] = out.astype(o_ref.dtype)


def _invariant_spec(block_shape, index_map):
    """Grid-invariant input: single-buffer it (halves its VMEM footprint)."""
    try:
        return pl.BlockSpec(block_shape, index_map, pipeline_mode=pl.Buffered(1))
    except Exception:  # older Pallas without pipeline_mode — default buffering
        return pl.BlockSpec(block_shape, index_map)


def _pick_tile(T, target):
    if T <= target:
        return T
    for cand in range(min(target, T), 0, -1):
        if cand % 16 == 0 and T % cand == 0:
            return cand
    return T


def infini_attention(x, wq, wk, wv, wo, gate, inv_freq, num_heads, *, tq=None, tk=None):
    B, T, H = x.shape
    assert H % num_heads == 0
    head_dim = H // num_heads
    assert num_heads <= 128, "running stats use one VMEM lane per head"

    # ---- generation-aware tiling / VMEM budget --------------------------
    try:
        vmem_cap = int(pltpu.get_tpu_info().vmem_capacity_bytes)
    except Exception:
        vmem_cap = 64 * 1024 * 1024                   # v7x-safe fallback
    big_vmem = vmem_cap >= 96 * 1024 * 1024           # v5e/v6e: 128 MiB
    target = 512 if big_vmem else 256
    tq = _pick_tile(T, target) if tq is None else tq
    tk = _pick_tile(T, target) if tk is None else tk
    assert T % tq == 0 and T % tk == 0
    assert (tq % 16 == 0 or tq == T) and (tk % 16 == 0 or tk == T), \
        "bf16 x tiles want second-to-last dims that are multiples of 16"

    scale = 1.0 / (head_dim ** 0.5)

    # ---- q-independent precompute (plain XLA, done exactly once) --------
    xf = x.astype(jnp.float32)
    q = xf @ wq.T.astype(jnp.float32)
    k = xf @ wk.T.astype(jnp.float32)
    v = xf @ wv.T.astype(jnp.float32)

    t = jnp.arange(T, dtype=jnp.float32)
    freqs = jnp.einsum('i,j->ij', t, inv_freq.astype(jnp.float32))     # (T, H/2)
    emb = jnp.concatenate([freqs, freqs], axis=-1)[None]               # (1, T, H)
    cos, sin = jnp.cos(emb), jnp.sin(emb)

    def rot_half(a):
        a1, a2 = jnp.split(a, 2, axis=-1)
        return jnp.concatenate([-a2, a1], axis=-1)

    q_rot = q * cos + rot_half(q) * sin
    k_rot = k * cos + rot_half(k) * sin

    # Compressive memory & norm per (batch, head) — hoisted out of the kernel.
    kh = k_rot.reshape(B, T, num_heads, head_dim)
    vh = v.reshape(B, T, num_heads, head_dim)
    k_act = jnp.where(kh > 0, kh + 1.0, jnp.exp(kh))                   # elu(k) + 1
    memory = jnp.einsum('bthd,bthe->bhde', k_act, vh)                  # (B, nh, hd, hd)
    norm = jnp.sum(k_act, axis=1)                                      # (B, nh, hd)
    # Pack per batch: mem_packed[b, d, h*hd + e] = memory[b, h, d, e]
    mem_packed = memory.transpose(0, 2, 1, 3).reshape(B, head_dim, H).astype(jnp.bfloat16)
    norm_packed = norm.reshape(B, 1, H).astype(jnp.float32)

    q_bf = q_rot.astype(jnp.bfloat16)                                  # rotated, unscaled
    k_bf = (k_rot * scale).astype(jnp.bfloat16)                        # 1/sqrt(hd) folded into K
    v_bf = v.astype(jnp.bfloat16)
    wo_t = wo.T.astype(jnp.bfloat16)

    sig = jax.nn.sigmoid(gate.reshape(num_heads).astype(jnp.float32))
    gate_full = jnp.repeat(sig, head_dim)[None, :]                     # (1, H) per-head lane-replicated

    # VMEM estimate (double-buffered streamed inputs, single-buffered weights).
    est = (2 * tq * H * 2                # q tile
           + 2 * tk * H * 2 * 2          # k + v tiles
           + 2 * head_dim * H * 2        # memory slab
           + 2 * H * 4                   # norm
           + H * H * 2                   # Wo^T (single-buffered)
           + H * 4                       # gate
           + 2 * tq * H * 4              # output tile
           + tq * H * 4 + 2 * tq * 128 * 4)   # scratch (acc + m + l)
    vmem_limit = int(min(vmem_cap - 8 * 1024 * 1024,
                         max(32 * 1024 * 1024, 2 * est)))

    grid = (B, T // tq, T // tk)
    kernel = functools.partial(_infini_attention_kernel,
                               num_heads=num_heads, head_dim=head_dim)

    return pl.pallas_call(
        kernel,
        out_shape=jax.ShapeDtypeStruct((B, T, H), jnp.float32),
        grid=grid,
        in_specs=[
            pl.BlockSpec((1, tq, H), lambda b, qi, ki: (b, qi, 0)),         # Q (rotated)
            pl.BlockSpec((1, tk, H), lambda b, qi, ki: (b, ki, 0)),         # K (rotated, pre-scaled)
            pl.BlockSpec((1, tk, H), lambda b, qi, ki: (b, ki, 0)),         # V
            pl.BlockSpec((1, head_dim, H), lambda b, qi, ki: (b, 0, 0)),    # memory slab
            pl.BlockSpec((1, 1, H), lambda b, qi, ki: (b, 0, 0)),           # norm
            _invariant_spec((H, H), lambda b, qi, ki: (0, 0)),              # Wo^T
            _invariant_spec((1, H), lambda b, qi, ki: (0, 0)),              # sigmoid(gate)
        ],
        out_specs=pl.BlockSpec((1, tq, H), lambda b, qi, ki: (b, qi, 0)),
        scratch_shapes=[
            pltpu.VMEM((tq, 128), jnp.float32),    # running softmax max (lane h = head h)
            pltpu.VMEM((tq, 128), jnp.float32),    # running softmax sum
            pltpu.VMEM((tq, H), jnp.float32),      # attention numerator / comb buffer
        ],
        compiler_params=pltpu.CompilerParams(
            dimension_semantics=("parallel", "parallel", "arbitrary"),
            vmem_limit_bytes=vmem_limit),
    )(q_bf, k_bf, v_bf, mem_packed, norm_packed, wo_t, gate_full)


def infini_attention_ref(x, wq, wk, wv, wo, gate, inv_freq, num_heads):
    """Pure-JAX f32 reference mirroring the PyTorch forward exactly."""
    B, T, H = x.shape
    hd = H // num_heads
    q = x @ wq.T
    k = x @ wk.T
    v = x @ wv.T
    t = jnp.arange(T, dtype=jnp.float32)
    freqs = jnp.einsum('i,j->ij', t, inv_freq)
    emb = jnp.concatenate([freqs, freqs], axis=-1)[None]               # (1, T, H)
    cos, sin = jnp.cos(emb), jnp.sin(emb)

    def rot_half(a):
        a1, a2 = jnp.split(a, 2, axis=-1)
        return jnp.concatenate([-a2, a1], axis=-1)

    q = q * cos + rot_half(q) * sin
    k = k * cos + rot_half(k) * sin
    qh = q.reshape(B, T, num_heads, hd).transpose(0, 2, 1, 3)
    kh = k.reshape(B, T, num_heads, hd).transpose(0, 2, 1, 3)
    vh = v.reshape(B, T, num_heads, hd).transpose(0, 2, 1, 3)

    k_act = jax.nn.elu(kh) + 1.0
    memory = jnp.einsum('bhtd,bhte->bhde', k_act, vh)
    norm = jnp.sum(k_act, axis=2)                                      # (B, nH, hd)
    q_act = jax.nn.elu(qh) + 1.0
    mem_out = jnp.einsum('bhtd,bhde->bhte', q_act, memory)
    denom = jnp.einsum('bhtd,bhd->bht', q_act, norm)[..., None]
    mem_out = mem_out / denom

    scores = jnp.einsum('bhtd,bhsd->bhts', qh, kh) / jnp.sqrt(jnp.float32(hd))
    p = jax.nn.softmax(scores, axis=-1)
    attn = jnp.einsum('bhts,bhsd->bhtd', p, vh)

    sig = jax.nn.sigmoid(gate).reshape(1, num_heads, 1, 1)
    comb = sig * mem_out + (1.0 - sig) * attn
    comb = comb.transpose(0, 2, 1, 3).reshape(B, T, H)
    return comb @ wo.T


if __name__ == "__main__":
    B, T, H, NH = 2, 32, 32, 4                                         # head_dim = 8; grid = (2, 2, 2)

    key = jax.random.PRNGKey(0)
    kx, kq, kk, kv, ko = jax.random.split(key, 5)
    w_scale = 1.0 / (H ** 0.5)
    x = jax.random.normal(kx, (B, T, H), jnp.float32)
    wq = jax.random.normal(kq, (H, H), jnp.float32) * w_scale
    wk = jax.random.normal(kk, (H, H), jnp.float32) * w_scale
    wv = jax.random.normal(kv, (H, H), jnp.float32) * w_scale
    wo = jax.random.normal(ko, (H, H), jnp.float32) * w_scale
    gate = jnp.zeros((1, NH, 1, 1), jnp.float32)                       # torch.full(..., 0.0)
    inv_freq = 1.0 / (10000.0 ** (jnp.arange(0, H, 2, dtype=jnp.float32) / H))

    out = infini_attention(x, wq, wk, wv, wo, gate, inv_freq, NH, tq=16, tk=16)
    out = jax.block_until_ready(out)

    ref = infini_attention_ref(x, wq, wk, wv, wo, gate, inv_freq, NH)
    max_err = float(jnp.max(jnp.abs(out - ref)))
    # bf16 matmul inputs (f32 accumulation) -> tolerance accordingly.
    assert jnp.allclose(out, ref, atol=5e-2, rtol=5e-2), f"max_err={max_err}"
    print("KERNEL_OK")
</pallas_src>

<mosaic_0001>
module attributes {stable_mosaic.version = 11 : i64} {
  func.func @_infini_attention_kernel(%arg0: i32, %arg1: i32, %arg2: i32, %arg3: memref<1x16x32xbf16, #tpu.memory_space<vmem>>, %arg4: memref<1x16x32xbf16, #tpu.memory_space<vmem>>, %arg5: memref<1x16x32xbf16, #tpu.memory_space<vmem>>, %arg6: memref<1x8x32xbf16, #tpu.memory_space<vmem>>, %arg7: memref<1x1x32xf32, #tpu.memory_space<vmem>>, %arg8: memref<32x32xbf16, #tpu.memory_space<vmem>>, %arg9: memref<1x32xf32, #tpu.memory_space<vmem>>, %arg10: memref<1x16x32xf32, #tpu.memory_space<vmem>>, %arg11: memref<16x128xf32, #tpu.memory_space<vmem>>, %arg12: memref<16x128xf32, #tpu.memory_space<vmem>>, %arg13: memref<16x32xf32, #tpu.memory_space<vmem>>) attributes {dimension_semantics = [#tpu.dimension_semantics<parallel>, #tpu.dimension_semantics<parallel>, #tpu.dimension_semantics<arbitrary>], iteration_bounds = array<i64: 2, 2, 2>, scalar_prefetch = 0 : i64, scratch_operands = 3 : i64, tpu.core_type = #tpu.core_type<tc>, window_params = [{transform_indices = @transform_0, window_bounds = array<i64: 1, 16, 32>}, {transform_indices = @transform_1, window_bounds = array<i64: 1, 16, 32>}, {transform_indices = @transform_2, window_bounds = array<i64: 1, 16, 32>}, {transform_indices = @transform_3, window_bounds = array<i64: 1, 8, 32>}, {transform_indices = @transform_4, window_bounds = array<i64: 1, 1, 32>}, {pipeline_mode = #tpu.pipeline_mode<synchronous>, transform_indices = @transform_5, window_bounds = array<i64: 32, 32>}, {pipeline_mode = #tpu.pipeline_mode<synchronous>, transform_indices = @transform_6, window_bounds = array<i64: 1, 32>}, {transform_indices = @transform_7, window_bounds = array<i64: 1, 16, 32>}]} {
    %c0_i32 = arith.constant 0 : i32
    %0 = arith.cmpi eq, %arg2, %c0_i32 : i32
    %1 = arith.extui %0 : i1 to i32
    %c0_i32_0 = arith.constant 0 : i32
    %2 = arith.cmpi ne, %1, %c0_i32_0 : i32
    scf.if %2 {
      %cst_67 = arith.constant 0xFF800000 : f32
      %120 = vector.broadcast %cst_67 : f32 to vector<16x128xf32>
      %c0_68 = arith.constant 0 : index
      %c0_69 = arith.constant 0 : index
      %121 = vector.load %arg11[%c0_68, %c0_69] : memref<16x128xf32, #tpu.memory_space<vmem>>, vector<16x128xf32>
      tpu.vector_store %arg11[%c0_68, %c0_69], %120 {strides = array<i32>} : memref<16x128xf32, #tpu.memory_space<vmem>>, vector<16x128xf32>,
      %cst_70 = arith.constant 0.000000e+00 : f32
      %122 = vector.broadcast %cst_70 : f32 to vector<16x128xf32>
      %c0_71 = arith.constant 0 : index
      %c0_72 = arith.constant 0 : index
      %123 = vector.load %arg12[%c0_71, %c0_72] : memref<16x128xf32, #tpu.memory_space<vmem>>, vector<16x128xf32>
      tpu.vector_store %arg12[%c0_71, %c0_72], %122 {strides = array<i32>} : memref<16x128xf32, #tpu.memory_space<vmem>>, vector<16x128xf32>,
      %cst_73 = arith.constant 0.000000e+00 : f32
      %124 = vector.broadcast %cst_73 : f32 to vector<16x32xf32>
      %c0_74 = arith.constant 0 : index
      %c0_75 = arith.constant 0 : index
      %125 = vector.load %arg13[%c0_74, %c0_75] : memref<16x32xf32, #tpu.memory_space<vmem>>, vector<16x32xf32>
      tpu.vector_store %arg13[%c0_74, %c0_75], %124 {strides = array<i32>} : memref<16x32xf32, #tpu.memory_space<vmem>>, vector<16x32xf32>,
    } else {
    }
    %c0 = arith.constant 0 : index
    %c0_1 = arith.constant 0 : index
    %c0_2 = arith.constant 0 : index
    %3 = vector.load %arg3[%c0, %c0_1, %c0_2] : memref<1x16x32xbf16, #tpu.memory_space<vmem>>, vector<1x16x32xbf16>
    %4 = vector.shape_cast %3 : vector<1x16x32xbf16> to vector<16x32xbf16>
    %c0_3 = arith.constant 0 : index
    %c0_4 = arith.constant 0 : index
    %c0_5 = arith.constant 0 : index
    %5 = vector.load %arg4[%c0_3, %c0_4, %c0_5] : memref<1x16x32xbf16, #tpu.memory_space<vmem>>, vector<1x16x32xbf16>
    %6 = vector.shape_cast %5 : vector<1x16x32xbf16> to vector<16x32xbf16>
    %c0_6 = arith.constant 0 : index
    %c0_7 = arith.constant 0 : index
    %c0_8 = arith.constant 0 : index
    %7 = vector.load %arg5[%c0_6, %c0_7, %c0_8] : memref<1x16x32xbf16, #tpu.memory_space<vmem>>, vector<1x16x32xbf16>
    %8 = vector.shape_cast %7 : vector<1x16x32xbf16> to vector<16x32xbf16>
    %9 = vector.extract_strided_slice %4 {offsets = [0, 0], sizes = [16, 8], strides = [1, 1]} : vector<16x32xbf16> to vector<16x8xbf16>
    %10 = vector.extract_strided_slice %6 {offsets = [0, 0], sizes = [16, 8], strides = [1, 1]} : vector<16x32xbf16> to vector<16x8xbf16>
    %11 = vector.extract_strided_slice %8 {offsets = [0, 0], sizes = [16, 8], strides = [1, 1]} : vector<16x32xbf16> to vector<16x8xbf16>
    "tpu.trace_start"() <{level = 10 : i32, message = "qd,kd->qk"}> : () -> ()
    %cst = arith.constant dense<0.000000e+00> : vector<16x16xf32>
    %12 = tpu.matmul %9, %10, %cst {dimension_numbers = #tpu.dot_dimension_numbers<[1], [1], [0], [0], [0, 0, 1, 0], [], []>} : vector<16x8xbf16>, vector<16x8xbf16>, vector<16x16xf32> -> vector<16x16xf32>
    "tpu.trace_stop"() : () -> ()
    %c0_9 = arith.constant 0 : index
    %c0_10 = arith.constant 0 : index
    %13 = vector.load %arg11[%c0_9, %c0_10] : memref<16x128xf32, #tpu.memory_space<vmem>>, vector<16x1xf32>
    %c0_11 = arith.constant 0 : index
    %c0_12 = arith.constant 0 : index
    %14 = vector.load %arg12[%c0_11, %c0_12] : memref<16x128xf32, #tpu.memory_space<vmem>>, vector<16x1xf32>
    %cst_13 = arith.constant dense<0xFF800000> : vector<16xf32>
    %15 = vector.multi_reduction <maximumf>, %12, %cst_13 [1] : vector<16x16xf32> to vector<16xf32>
    %16 = vector.shape_cast %15 : vector<16xf32> to vector<16x1xf32>
    %17 = arith.maximumf %13, %16 : vector<16x1xf32>
    %18 = arith.subf %13, %17 : vector<16x1xf32>
    %19 = math.exp %18 : vector<16x1xf32>
    %20 = vector.broadcast %17 : vector<16x1xf32> to vector<16x16xf32>
    %21 = arith.subf %12, %20 : vector<16x16xf32>
    %22 = math.exp %21 : vector<16x16xf32>
    %23 = arith.mulf %19, %14 : vector<16x1xf32>
    %cst_14 = arith.constant dense<0.000000e+00> : vector<16xf32>
    %24 = vector.multi_reduction <add>, %22, %cst_14 [1] : vector<16x16xf32> to vector<16xf32>
    %25 = vector.shape_cast %24 : vector<16xf32> to vector<16x1xf32>
    %26 = arith.addf %23, %25 : vector<16x1xf32>
    %c0_15 = arith.constant 0 : index
    %c0_16 = arith.constant 0 : index
    %27 = vector.load %arg12[%c0_15, %c0_16] : memref<16x128xf32, #tpu.memory_space<vmem>>, vector<16x1xf32>
    tpu.vector_store %arg12[%c0_15, %c0_16], %26 {strides = array<i32>} : memref<16x128xf32, #tpu.memory_space<vmem>>, vector<16x1xf32>,
    %c0_17 = arith.constant 0 : index
    %c0_18 = arith.constant 0 : index
    %28 = vector.load %arg11[%c0_17, %c0_18] : memref<16x128xf32, #tpu.memory_space<vmem>>, vector<16x1xf32>
    tpu.vector_store %arg11[%c0_17, %c0_18], %17 {strides = array<i32>} : memref<16x128xf32, #tpu.memory_space<vmem>>, vector<16x1xf32>,
    %29 = arith.truncf %22 : vector<16x16xf32> to vector<16x16xbf16>
    "tpu.trace_start"() <{level = 10 : i32, message = "qk,kd->qd"}> : () -> ()
    %cst_19 = arith.constant dense<0.000000e+00> : vector<16x8xf32>
    %30 = tpu.matmul %29, %11, %cst_19 {dimension_numbers = #tpu.dot_dimension_numbers<[1], [0], [0], [1], [0, 0, 1, 1], [], []>} : vector<16x16xbf16>, vector<16x8xbf16>, vector<16x8xf32> -> vector<16x8xf32>
    "tpu.trace_stop"() : () -> ()
    %c0_20 = arith.constant 0 : index
    %c0_21 = arith.constant 0 : index
    %31 = vector.load %arg13[%c0_20, %c0_21] : memref<16x32xf32, #tpu.memory_space<vmem>>, vector<16x8xf32>
    %32 = vector.broadcast %19 : vector<16x1xf32> to vector<16x8xf32>
    %33 = arith.mulf %32, %31 : vector<16x8xf32>
    %34 = arith.addf %33, %30 : vector<16x8xf32>
    %c0_22 = arith.constant 0 : index
    %c0_23 = arith.constant 0 : index
    %35 = vector.load %arg13[%c0_22, %c0_23] : memref<16x32xf32, #tpu.memory_space<vmem>>, vector<16x8xf32>
    tpu.vector_store %arg13[%c0_22, %c0_23], %34 {strides = array<i32>} : memref<16x32xf32, #tpu.memory_space<vmem>>, vector<16x8xf32>,
    %36 = vector.extract_strided_slice %4 {offsets = [0, 8], sizes = [16, 8], strides = [1, 1]} : vector<16x32xbf16> to vector<16x8xbf16>
    %37 = vector.extract_strided_slice %6 {offsets = [0, 8], sizes = [16, 8], strides = [1, 1]} : vector<16x32xbf16> to vector<16x8xbf16>
    %38 = vector.extract_strided_slice %8 {offsets = [0, 8], sizes = [16, 8], strides = [1, 1]} : vector<16x32xbf16> to vector<16x8xbf16>
    "tpu.trace_start"() <{level = 10 : i32, message = "qd,kd->qk"}> : () -> ()
    %cst_24 = arith.constant dense<0.000000e+00> : vector<16x16xf32>
    %39 = tpu.matmul %36, %37, %cst_24 {dimension_numbers = #tpu.dot_dimension_numbers<[1], [1], [0], [0], [0, 0, 1, 0], [], []>} : vector<16x8xbf16>, vector<16x8xbf16>, vector<16x16xf32> -> vector<16x16xf32>
    "tpu.trace_stop"() : () -> ()
    %c0_25 = arith.constant 0 : index
    %c1 = arith.constant 1 : index
    %40 = vector.load %arg11[%c0_25, %c1] : memref<16x128xf32, #tpu.memory_space<vmem>>, vector<16x1xf32>
    %c0_26 = arith.constant 0 : index
    %c1_27 = arith.constant 1 : index
    %41 = vector.load %arg12[%c0_26, %c1_27] : memref<16x128xf32, #tpu.memory_space<vmem>>, vector<16x1xf32>
    %cst_28 = arith.constant dense<0xFF800000> : vector<16xf32>
    %42 = vector.multi_reduction <maximumf>, %39, %cst_28 [1] : vector<16x16xf32> to vector<16xf32>
    %43 = vector.shape_cast %42 : vector<16xf32> to vector<16x1xf32>
    %44 = arith.maximumf %40, %43 : vector<16x1xf32>
    %45 = arith.subf %40, %44 : vector<16x1xf32>
    %46 = math.exp %45 : vector<16x1xf32>
    %47 = vector.broadcast %44 : vector<16x1xf32> to vector<16x16xf32>
    %48 = arith.subf %39, %47 : vector<16x16xf32>
    %49 = math.exp %48 : vector<16x16xf32>
    %50 = arith.mulf %46, %41 : vector<16x1xf32>
    %cst_29 = arith.constant dense<0.000000e+00> : vector<16xf32>
    %51 = vector.multi_reduction <add>, %49, %cst_29 [1] : vector<16x16xf32> to vector<16xf32>
    %52 = vector.shape_cast %51 : vector<16xf32> to vector<16x1xf32>
    %53 = arith.addf %50, %52 : vector<16x1xf32>
    %c0_30 = arith.constant 0 : index
    %c1_31 = arith.constant 1 : index
    %54 = vector.load %arg12[%c0_30, %c1_31] : memref<16x128xf32, #tpu.memory_space<vmem>>, vector<16x1xf32>
    tpu.vector_store %arg12[%c0_30, %c1_31], %53 {strides = array<i32>} : memref<16x128xf32, #tpu.memory_space<vmem>>, vector<16x1xf32>,
    %c0_32 = arith.constant 0 : index
    %c1_33 = arith.constant 1 : index
    %55 = vector.load %arg11[%c0_32, %c1_33] : memref<16x128xf32, #tpu.memory_space<vmem>>, vector<16x1xf32>
    tpu.vector_store %arg11[%c0_32, %c1_33], %44 {strides = array<i32>} : memref<16x128xf32, #tpu.memory_space<vmem>>, vector<16x1xf32>,
    %56 = arith.truncf %49 : vector<16x16xf32> to vector<16x16xbf16>
    "tpu.trace_start"() <{level = 10 : i32, message = "qk,kd->qd"}> : () -> ()
    %cst_34 = arith.constant dense<0.000000e+00> : vector<16x8xf32>
    %57 = tpu.matmul %56, %38, %cst_34 {dimension_numbers = #tpu.dot_dimension_numbers<[1], [0], [0], [1], [0, 0, 1, 1], [], []>} : vector<16x16xbf16>, vector<16x8xbf16>, vector<16x8xf32> -> vector<16x8xf32>
    "tpu.trace_stop"() : () -> ()
    %c0_35 = arith.constant 0 : index
    %c8 = arith.constant 8 : index
    %58 = vector.load %arg13[%c0_35, %c8] : memref<16x32xf32, #tpu.memory_space<vmem>>, vector<16x8xf32>
    %59 = vector.broadcast %46 : vector<16x1xf32> to vector<16x8xf32>
    %60 = arith.mulf %59, %58 : vector<16x8xf32>
    %61 = arith.addf %60, %57 : vector<16x8xf32>
    %c0_36 = arith.constant 0 : index
    %c8_37 = arith.constant 8 : index
    %62 = vector.load %arg13[%c0_36, %c8_37] : memref<16x32xf32, #tpu.memory_space<vmem>>, vector<16x8xf32>
    tpu.vector_store %arg13[%c0_36, %c8_37], %61 {strides = array<i32>} : memref<16x32xf32, #tpu.memory_space<vmem>>, vector<16x8xf32>,
    %63 = vector.extract_strided_slice %4 {offsets = [0, 16], sizes = [16, 8], strides = [1, 1]} : vector<16x32xbf16> to vector<16x8xbf16>
    %64 = vector.extract_strided_slice %6 {offsets = [0, 16], sizes = [16, 8], strides = [1, 1]} : vector<16x32xbf16> to vector<16x8xbf16>
    %65 = vector.extract_strided_slice %8 {offsets = [0, 16], sizes = [16, 8], strides = [1, 1]} : vector<16x32xbf16> to vector<16x8xbf16>
    "tpu.trace_start"() <{level = 10 : i32, message = "qd,kd->qk"}> : () -> ()
    %cst_38 = arith.constant dense<0.000000e+00> : vector<16x16xf32>
    %66 = tpu.matmul %63, %64, %cst_38 {dimension_numbers = #tpu.dot_dimension_numbers<[1], [1], [0], [0], [0, 0, 1, 0], [], []>} : vector<16x8xbf16>, vector<16x8xbf16>, vector<16x16xf32> -> vector<16x16xf32>
    "tpu.trace_stop"() : () -> ()
    %c0_39 = arith.constant 0 : index
    %c2 = arith.constant 2 : index
    %67 = vector.load %arg11[%c0_39, %c2] : memref<16x128xf32, #tpu.memory_space<vmem>>, vector<16x1xf32>
    %c0_40 = arith.constant 0 : index
    %c2_41 = arith.constant 2 : index
    %68 = vector.load %arg12[%c0_40, %c2_41] : memref<16x128xf32, #tpu.memory_space<vmem>>, vector<16x1xf32>
    %cst_42 = arith.constant dense<0xFF800000> : vector<16xf32>
    %69 = vector.multi_reduction <maximumf>, %66, %cst_42 [1] : vector<16x16xf32> to vector<16xf32>
    %70 = vector.shape_cast %69 : vector<16xf32> to vector<16x1xf32>
    %71 = arith.maximumf %67, %70 : vector<16x1xf32>
    %72 = arith.subf %67, %71 : vector<16x1xf32>
    %73 = math.exp %72 : vector<16x1xf32>
    %74 = vector.broadcast %71 : vector<16x1xf32> to vector<16x16xf32>
    %75 = arith.subf %66, %74 : vector<16x16xf32>
    %76 = math.exp %75 : vector<16x16xf32>
    %77 = arith.mulf %73, %68 : vector<16x1xf32>
    %cst_43 = arith.constant dense<0.000000e+00> : vector<16xf32>
    %78 = vector.multi_reduction <add>, %76, %cst_43 [1] : vector<16x16xf32> to vector<16xf32>
    %79 = vector.shape_cast %78 : vector<16xf32> to vector<16x1xf32>
    %80 = arith.addf %77, %79 : vector<16x1xf32>
    %c0_44 = arith.constant 0 : index
    %c2_45 = arith.constant 2 : index
    %81 = vector.load %arg12[%c0_44, %c2_45] : memref<16x128xf32, #tpu.memory_space<vmem>>, vector<16x1xf32>
    tpu.vector_store %arg12[%c0_44, %c2_45], %80 {strides = array<i32>} : memref<16x128xf32, #tpu.memory_space<vmem>>, vector<16x1xf32>,
    %c0_46 = arith.constant 0 : index
    %c2_47 = arith.constant 2 : index
    %82 = vector.load %arg11[%c0_46, %c2_47] : memref<16x128xf32, #tpu.memory_space<vmem>>, vector<16x1xf32>
    tpu.vector_store %arg11[%c0_46, %c2_47], %71 {strides = array<i32>} : memref<16x128xf32, #tpu.memory_space<vmem>>, vector<16x1xf32>,
    %83 = arith.truncf %76 : vector<16x16xf32> to vector<16x16xbf16>
    "tpu.trace_start"() <{level = 10 : i32, message = "qk,kd->qd"}> : () -> ()
    %cst_48 = arith.constant dense<0.000000e+00> : vector<16x8xf32>
    %84 = tpu.matmul %83, %65, %cst_48 {dimension_numbers = #tpu.dot_dimension_numbers<[1], [0], [0], [1], [0, 0, 1, 1], [], []>} : vector<16x16xbf16>, vector<16x8xbf16>, vector<16x8xf32> -> vector<16x8xf32>
    "tpu.trace_stop"() : () -> ()
    %c0_49 = arith.constant 0 : index
    %c16 = arith.constant 16 : index
    %85 = vector.load %arg13[%c0_49, %c16] : memref<16x32xf32, #tpu.memory_space<vmem>>, vector<16x8xf32>
    %86 = vector.broadcast %73 : vector<16x1xf32> to vector<16x8xf32>
    %87 = arith.mulf %86, %85 : vector<16x8xf32>
    %88 = arith.addf %87, %84 : vector<16x8xf32>
    %c0_50 = arith.constant 0 : index
    %c16_51 = arith.constant 16 : index
    %89 = vector.load %arg13[%c0_50, %c16_51] : memref<16x32xf32, #tpu.memory_space<vmem>>, vector<16x8xf32>
    tpu.vector_store %arg13[%c0_50, %c16_51], %88 {strides = array<i32>} : memref<16x32xf32, #tpu.memory_space<vmem>>, vector<16x8xf32>,
    %90 = vector.extract_strided_slice %4 {offsets = [0, 24], sizes = [16, 8], strides = [1, 1]} : vector<16x32xbf16> to vector<16x8xbf16>
    %91 = vector.extract_strided_slice %6 {offsets = [0, 24], sizes = [16, 8], strides = [1, 1]} : vector<16x32xbf16> to vector<16x8xbf16>
    %92 = vector.extract_strided_slice %8 {offsets = [0, 24], sizes = [16, 8], strides = [1, 1]} : vector<16x32xbf16> to vector<16x8xbf16>
    "tpu.trace_start"() <{level = 10 : i32, message = "qd,kd->qk"}> : () -> ()
    %cst_52 = arith.constant dense<0.000000e+00> : vector<16x16xf32>
    %93 = tpu.matmul %90, %91, %cst_52 {dimension_numbers = #tpu.dot_dimension_numbers<[1], [1], [0], [0], [0, 0, 1, 0], [], []>} : vector<16x8xbf16>, vector<16x8xbf16>, vector<16x16xf32> -> vector<16x16xf32>
    "tpu.trace_stop"() : () -> ()
    %c0_53 = arith.constant 0 : index
    %c3 = arith.constant 3 : index
    %94 = vector.load %arg11[%c0_53, %c3] : memref<16x128xf32, #tpu.memory_space<vmem>>, vector<16x1xf32>
    %c0_54 = arith.constant 0 : index
    %c3_55 = arith.constant 3 : index
    %95 = vector.load %arg12[%c0_54, %c3_55] : memref<16x128xf32, #tpu.memory_space<vmem>>, vector<16x1xf32>
    %cst_56 = arith.constant dense<0xFF800000> : vector<16xf32>
    %96 = vector.multi_reduction <maximumf>, %93, %cst_56 [1] : vector<16x16xf32> to vector<16xf32>
    %97 = vector.shape_cast %96 : vector<16xf32> to vector<16x1xf32>
    %98 = arith.maximumf %94, %97 : vector<16x1xf32>
    %99 = arith.subf %94, %98 : vector<16x1xf32>
    %100 = math.exp %99 : vector<16x1xf32>
    %101 = vector.broadcast %98 : vector<16x1xf32> to vector<16x16xf32>
    %102 = arith.subf %93, %101 : vector<16x16xf32>
    %103 = math.exp %102 : vector<16x16xf32>
    %104 = arith.mulf %100, %95 : vector<16x1xf32>
    %cst_57 = arith.constant dense<0.000000e+00> : vector<16xf32>
    %105 = vector.multi_reduction <add>, %103, %cst_57 [1] : vector<16x16xf32> to vector<16xf32>
    %106 = vector.shape_cast %105 : vector<16xf32> to vector<16x1xf32>
    %107 = arith.addf %104, %106 : vector<16x1xf32>
    %c0_58 = arith.constant 0 : index
    %c3_59 = arith.constant 3 : index
    %108 = vector.load %arg12[%c0_58, %c3_59] : memref<16x128xf32, #tpu.memory_space<vmem>>, vector<16x1xf32>
    tpu.vector_store %arg12[%c0_58, %c3_59], %107 {strides = array<i32>} : memref<16x128xf32, #tpu.memory_space<vmem>>, vector<16x1xf32>,
    %c0_60 = arith.constant 0 : index
    %c3_61 = arith.constant 3 : index
    %109 = vector.load %arg11[%c0_60, %c3_61] : memref<16x128xf32, #tpu.memory_space<vmem>>, vector<16x1xf32>
    tpu.vector_store %arg11[%c0_60, %c3_61], %98 {strides = array<i32>} : memref<16x128xf32, #tpu.memory_space<vmem>>, vector<16x1xf32>,
    %110 = arith.truncf %103 : vector<16x16xf32> to vector<16x16xbf16>
    "tpu.trace_start"() <{level = 10 : i32, message = "qk,kd->qd"}> : () -> ()
    %cst_62 = arith.constant dense<0.000000e+00> : vector<16x8xf32>
    %111 = tpu.matmul %110, %92, %cst_62 {dimension_numbers = #tpu.dot_dimension_numbers<[1], [0], [0], [1], [0, 0, 1, 1], [], []>} : vector<16x16xbf16>, vector<16x8xbf16>, vector<16x8xf32> -> vector<16x8xf32>
    "tpu.trace_stop"() : () -> ()
    %c0_63 = arith.constant 0 : index
    %c24 = arith.constant 24 : index
    %112 = vector.load %arg13[%c0_63, %c24] : memref<16x32xf32, #tpu.memory_space<vmem>>, vector<16x8xf32>
    %113 = vector.broadcast %100 : vector<16x1xf32> to vector<16x8xf32>
    %114 = arith.mulf %113, %112 : vector<16x8xf32>
    %115 = arith.addf %114, %111 : vector<16x8xf32>
    %c0_64 = arith.constant 0 : index
    %c24_65 = arith.constant 24 : index
    %116 = vector.load %arg13[%c0_64, %c24_65] : memref<16x32xf32, #tpu.memory_space<vmem>>, vector<16x8xf32>
    tpu.vector_store %arg13[%c0_64, %c24_65], %115 {strides = array<i32>} : memref<16x32xf32, #tpu.memory_space<vmem>>, vector<16x8xf32>,
    %c1_i32 = arith.constant 1 : i32
    %117 = arith.cmpi eq, %arg2, %c1_i32 : i32
    %118 = arith.extui %117 : i1 to i32
    %c0_i32_66 = arith.constant 0 : i32
    %119 = arith.cmpi ne, %118, %c0_i32_66 : i32
    scf.if %119 {
      %c0_67 = arith.constant 0 : index
      %c0_68 = arith.constant 0 : index
      %120 = vector.load %arg9[%c0_67, %c0_68] : memref<1x32xf32, #tpu.memory_space<vmem>>, vector<1x32xf32>
      %c0_69 = arith.constant 0 : index
      %c0_70 = arith.constant 0 : index
      %c0_71 = arith.constant 0 : index
      %121 = vector.load %arg6[%c0_69, %c0_70, %c0_71] : memref<1x8x32xbf16, #tpu.memory_space<vmem>>, vector<1x8x32xbf16>
      %122 = vector.shape_cast %121 : vector<1x8x32xbf16> to vector<8x32xbf16>
      %c0_72 = arith.constant 0 : index
      %c0_73 = arith.constant 0 : index
      %c0_74 = arith.constant 0 : index
      %123 = vector.load %arg7[%c0_72, %c0_73, %c0_74] : memref<1x1x32xf32, #tpu.memory_space<vmem>>, vector<1x1x32xf32>
      %124 = vector.shape_cast %123 : vector<1x1x32xf32> to vector<1x32xf32>
      %c0_75 = arith.constant 0 : index
      %c0_76 = arith.constant 0 : index
      %c0_77 = arith.constant 0 : index
      %125 = vector.load %arg3[%c0_75, %c0_76, %c0_77] : memref<1x16x32xbf16, #tpu.memory_space<vmem>>, vector<1x16x32xbf16>
      %126 = vector.shape_cast %125 : vector<1x16x32xbf16> to vector<16x32xbf16>
      %127 = arith.extf %126 : vector<16x32xbf16> to vector<16x32xf32>
      %cst_78 = arith.constant 0.000000e+00 : f32
      %128 = vector.broadcast %cst_78 : f32 to vector<16x32xf32>
      %129 = arith.cmpf ogt, %127, %128 : vector<16x32xf32>
      %cst_79 = arith.constant 1.000000e+00 : f32
      %130 = vector.broadcast %cst_79 : f32 to vector<16x32xf32>
      %131 = arith.addf %127, %130 : vector<16x32xf32>
      %132 = math.exp %127 : vector<16x32xf32>
      %133 = arith.select %129, %131, %132 : vector<16x32xi1>, vector<16x32xf32>
      %134 = arith.truncf %133 : vector<16x32xf32> to vector<16x32xbf16>
      %135 = vector.extract_strided_slice %134 {offsets = [0, 0], sizes = [16, 8], strides = [1, 1]} : vector<16x32xbf16> to vector<16x8xbf16>
      %136 = vector.extract_strided_slice %122 {offsets = [0, 0], sizes = [8, 8], strides = [1, 1]} : vector<8x32xbf16> to vector<8x8xbf16>
      %cst_80 = arith.constant dense<0.000000e+00> : vector<16x8xf32>
      %137 = tpu.matmul %135, %136, %cst_80 {dimension_numbers = #tpu.dot_dimension_numbers<[1], [0], [0], [1], [0, 0, 1, 1], [], []>} : vector<16x8xbf16>, vector<8x8xbf16>, vector<16x8xf32> -> vector<16x8xf32>
      %138 = vector.extract_strided_slice %133 {offsets = [0, 0], sizes = [16, 8], strides = [1, 1]} : vector<16x32xf32> to vector<16x8xf32>
      %139 = vector.extract_strided_slice %124 {offsets = [0, 0], sizes = [1, 8], strides = [1, 1]} : vector<1x32xf32> to vector<1x8xf32>
      %140 = vector.broadcast %139 : vector<1x8xf32> to vector<16x8xf32>
      %141 = arith.mulf %138, %140 : vector<16x8xf32>
      %cst_81 = arith.constant dense<0.000000e+00> : vector<16xf32>
      %142 = vector.multi_reduction <add>, %141, %cst_81 [1] : vector<16x8xf32> to vector<16xf32>
      %143 = vector.shape_cast %142 : vector<16xf32> to vector<16x1xf32>
      %c0_82 = arith.constant 0 : index
      %c0_83 = arith.constant 0 : index
      %144 = vector.load %arg13[%c0_82, %c0_83] : memref<16x32xf32, #tpu.memory_space<vmem>>, vector<16x8xf32>
      %c0_84 = arith.constant 0 : index
      %c0_85 = arith.constant 0 : index
      %145 = vector.load %arg12[%c0_84, %c0_85] : memref<16x128xf32, #tpu.memory_space<vmem>>, vector<16x1xf32>
      %146 = vector.broadcast %145 : vector<16x1xf32> to vector<16x8xf32>
      %147 = arith.divf %144, %146 : vector<16x8xf32>
      %148 = vector.extract_strided_slice %120 {offsets = [0, 0], sizes = [1, 8], strides = [1, 1]} : vector<1x32xf32> to vector<1x8xf32>
      %149 = vector.broadcast %143 : vector<16x1xf32> to vector<16x8xf32>
      %150 = arith.divf %137, %149 : vector<16x8xf32>
      %151 = vector.broadcast %148 : vector<1x8xf32> to vector<16x8xf32>
      %152 = arith.mulf %151, %150 : vector<16x8xf32>
      %cst_86 = arith.constant 1.000000e+00 : f32
      %153 = vector.broadcast %cst_86 : f32 to vector<1x8xf32>
      %154 = arith.subf %153, %148 : vector<1x8xf32>
      %155 = vector.broadcast %154 : vector<1x8xf32> to vector<16x8xf32>
      %156 = arith.mulf %155, %147 : vector<16x8xf32>
      %157 = arith.addf %152, %156 : vector<16x8xf32>
      %c0_87 = arith.constant 0 : index
      %c0_88 = arith.constant 0 : index
      %158 = vector.load %arg13[%c0_87, %c0_88] : memref<16x32xf32, #tpu.memory_space<vmem>>, vector<16x8xf32>
      tpu.vector_store %arg13[%c0_87, %c0_88], %157 {strides = array<i32>} : memref<16x32xf32, #tpu.memory_space<vmem>>, vector<16x8xf32>,
      %159 = vector.extract_strided_slice %134 {offsets = [0, 8], sizes = [16, 8], strides = [1, 1]} : vector<16x32xbf16> to vector<16x8xbf16>
      %160 = vector.extract_strided_slice %122 {offsets = [0, 8], sizes = [8, 8], strides = [1, 1]} : vector<8x32xbf16> to vector<8x8xbf16>
      %cst_89 = arith.constant dense<0.000000e+00> : vector<16x8xf32>
      %161 = tpu.matmul %159, %160, %cst_89 {dimension_numbers = #tpu.dot_dimension_numbers<[1], [0], [0], [1], [0, 0, 1, 1], [], []>} : vector<16x8xbf16>, vector<8x8xbf16>, vector<16x8xf32> -> vector<16x8xf32>
      %162 = vector.extract_strided_slice %133 {offsets = [0, 8], sizes = [16, 8], strides = [1, 1]} : vector<16x32xf32> to vector<16x8xf32>
      %163 = vector.extract_strided_slice %124 {offsets = [0, 8], sizes = [1, 8], strides = [1, 1]} : vector<1x32xf32> to vector<1x8xf32>
      %164 = vector.broadcast %163 : vector<1x8xf32> to vector<16x8xf32>
      %165 = arith.mulf %162, %164 : vector<16x8xf32>
      %cst_90 = arith.constant dense<0.000000e+00> : vector<16xf32>
      %166 = vector.multi_reduction <add>, %165, %cst_90 [1] : vector<16x8xf32> to vector<16xf32>
      %167 = vector.shape_cast %166 : vector<16xf32> to vector<16x1xf32>
      %c0_91 = arith.constant 0 : index
      %c8_92 = arith.constant 8 : index
      %168 = vector.load %arg13[%c0_91, %c8_92] : memref<16x32xf32, #tpu.memory_space<vmem>>, vector<16x8xf32>
      %c0_93 = arith.constant 0 : index
      %c1_94 = arith.constant 1 : index
      %169 = vector.load %arg12[%c0_93, %c1_94] : memref<16x128xf32, #tpu.memory_space<vmem>>, vector<16x1xf32>
      %170 = vector.broadcast %169 : vector<16x1xf32> to vector<16x8xf32>
      %171 = arith.divf %168, %170 : vector<16x8xf32>
      %172 = vector.extract_strided_slice %120 {offsets = [0, 8], sizes = [1, 8], strides = [1, 1]} : vector<1x32xf32> to vector<1x8xf32>
      %173 = vector.broadcast %167 : vector<16x1xf32> to vector<16x8xf32>
      %174 = arith.divf %161, %173 : vector<16x8xf32>
      %175 = vector.broadcast %172 : vector<1x8xf32> to vector<16x8xf32>
      %176 = arith.mulf %175, %174 : vector<16x8xf32>
      %cst_95 = arith.constant 1.000000e+00 : f32
      %177 = vector.broadcast %cst_95 : f32 to vector<1x8xf32>
      %178 = arith.subf %177, %172 : vector<1x8xf32>
      %179 = vector.broadcast %178 : vector<1x8xf32> to vector<16x8xf32>
      %180 = arith.mulf %179, %171 : vector<16x8xf32>
      %181 = arith.addf %176, %180 : vector<16x8xf32>
      %c0_96 = arith.constant 0 : index
      %c8_97 = arith.constant 8 : index
      %182 = vector.load %arg13[%c0_96, %c8_97] : memref<16x32xf32, #tpu.memory_space<vmem>>, vector<16x8xf32>
      tpu.vector_store %arg13[%c0_96, %c8_97], %181 {strides = array<i32>} : memref<16x32xf32, #tpu.memory_space<vmem>>, vector<16x8xf32>,
      %183 = vector.extract_strided_slice %134 {offsets = [0, 16], sizes = [16, 8], strides = [1, 1]} : vector<16x32xbf16> to vector<16x8xbf16>
      %184 = vector.extract_strided_slice %122 {offsets = [0, 16], sizes = [8, 8], strides = [1, 1]} : vector<8x32xbf16> to vector<8x8xbf16>
      %cst_98 = arith.constant dense<0.000000e+00> : vector<16x8xf32>
      %185 = tpu.matmul %183, %184, %cst_98 {dimension_numbers = #tpu.dot_dimension_numbers<[1], [0], [0], [1], [0, 0, 1, 1], [], []>} : vector<16x8xbf16>, vector<8x8xbf16>, vector<16x8xf32> -> vector<16x8xf32>
      %186 = vector.extract_strided_slice %133 {offsets = [0, 16], sizes = [16, 8], strides = [1, 1]} : vector<16x32xf32> to vector<16x8xf32>
      %187 = vector.extract_strided_slice %124 {offsets = [0, 16], sizes = [1, 8], strides = [1, 1]} : vector<1x32xf32> to vector<1x8xf32>
      %188 = vector.broadcast %187 : vector<1x8xf32> to vector<16x8xf32>
      %189 = arith.mulf %186, %188 : vector<16x8xf32>
      %cst_99 = arith.constant dense<0.000000e+00> : vector<16xf32>
      %190 = vector.multi_reduction <add>, %189, %cst_99 [1] : vector<16x8xf32> to vector<16xf32>
      %191 = vector.shape_cast %190 : vector<16xf32> to vector<16x1xf32>
      %c0_100 = arith.constant 0 : index
      %c16_101 = arith.constant 16 : index
      %192 = vector.load %arg13[%c0_100, %c16_101] : memref<16x32xf32, #tpu.memory_space<vmem>>, vector<16x8xf32>
      %c0_102 = arith.constant 0 : index
      %c2_103 = arith.constant 2 : index
      %193 = vector.load %arg12[%c0_102, %c2_103] : memref<16x128xf32, #tpu.memory_space<vmem>>, vector<16x1xf32>
      %194 = vector.broadcast %193 : vector<16x1xf32> to vector<16x8xf32>
      %195 = arith.divf %192, %194 : vector<16x8xf32>
      %196 = vector.extract_strided_slice %120 {offsets = [0, 16], sizes = [1, 8], strides = [1, 1]} : vector<1x32xf32> to vector<1x8xf32>
      %197 = vector.broadcast %191 : vector<16x1xf32> to vector<16x8xf32>
      %198 = arith.divf %185, %197 : vector<16x8xf32>
      %199 = vector.broadcast %196 : vector<1x8xf32> to vector<16x8xf32>
      %200 = arith.mulf %199, %198 : vector<16x8xf32>
      %cst_104 = arith.constant 1.000000e+00 : f32
      %201 = vector.broadcast %cst_104 : f32 to vector<1x8xf32>
      %202 = arith.subf %201, %196 : vector<1x8xf32>
      %203 = vector.broadcast %202 : vector<1x8xf32> to vector<16x8xf32>
      %204 = arith.mulf %203, %195 : vector<16x8xf32>
      %205 = arith.addf %200, %204 : vector<16x8xf32>
      %c0_105 = arith.constant 0 : index
      %c16_106 = arith.constant 16 : index
      %206 = vector.load %arg13[%c0_105, %c16_106] : memref<16x32xf32, #tpu.memory_space<vmem>>, vector<16x8xf32>
      tpu.vector_store %arg13[%c0_105, %c16_106], %205 {strides = array<i32>} : memref<16x32xf32, #tpu.memory_space<vmem>>, vector<16x8xf32>,
      %207 = vector.extract_strided_slice %134 {offsets = [0, 24], sizes = [16, 8], strides = [1, 1]} : vector<16x32xbf16> to vector<16x8xbf16>
      %208 = vector.extract_strided_slice %122 {offsets = [0, 24], sizes = [8, 8], strides = [1, 1]} : vector<8x32xbf16> to vector<8x8xbf16>
      %cst_107 = arith.constant dense<0.000000e+00> : vector<16x8xf32>
      %209 = tpu.matmul %207, %208, %cst_107 {dimension_numbers = #tpu.dot_dimension_numbers<[1], [0], [0], [1], [0, 0, 1, 1], [], []>} : vector<16x8xbf16>, vector<8x8xbf16>, vector<16x8xf32> -> vector<16x8xf32>
      %210 = vector.extract_strided_slice %133 {offsets = [0, 24], sizes = [16, 8], strides = [1, 1]} : vector<16x32xf32> to vector<16x8xf32>
      %211 = vector.extract_strided_slice %124 {offsets = [0, 24], sizes = [1, 8], strides = [1, 1]} : vector<1x32xf32> to vector<1x8xf32>
      %212 = vector.broadcast %211 : vector<1x8xf32> to vector<16x8xf32>
      %213 = arith.mulf %210, %212 : vector<16x8xf32>
      %cst_108 = arith.constant dense<0.000000e+00> : vector<16xf32>
      %214 = vector.multi_reduction <add>, %213, %cst_108 [1] : vector<16x8xf32> to vector<16xf32>
      %215 = vector.shape_cast %214 : vector<16xf32> to vector<16x1xf32>
      %c0_109 = arith.constant 0 : index
      %c24_110 = arith.constant 24 : index
      %216 = vector.load %arg13[%c0_109, %c24_110] : memref<16x32xf32, #tpu.memory_space<vmem>>, vector<16x8xf32>
      %c0_111 = arith.constant 0 : index
      %c3_112 = arith.constant 3 : index
      %217 = vector.load %arg12[%c0_111, %c3_112] : memref<16x128xf32, #tpu.memory_space<vmem>>, vector<16x1xf32>
      %218 = vector.broadcast %217 : vector<16x1xf32> to vector<16x8xf32>
      %219 = arith.divf %216, %218 : vector<16x8xf32>
      %220 = vector.extract_strided_slice %120 {offsets = [0, 24], sizes = [1, 8], strides = [1, 1]} : vector<1x32xf32> to vector<1x8xf32>
      %221 = vector.broadcast %215 : vector<16x1xf32> to vector<16x8xf32>
      %222 = arith.divf %209, %221 : vector<16x8xf32>
      %223 = vector.broadcast %220 : vector<1x8xf32> to vector<16x8xf32>
      %224 = arith.mulf %223, %222 : vector<16x8xf32>
      %cst_113 = arith.constant 1.000000e+00 : f32
      %225 = vector.broadcast %cst_113 : f32 to vector<1x8xf32>
      %226 = arith.subf %225, %220 : vector<1x8xf32>
      %227 = vector.broadcast %226 : vector<1x8xf32> to vector<16x8xf32>
      %228 = arith.mulf %227, %219 : vector<16x8xf32>
      %229 = arith.addf %224, %228 : vector<16x8xf32>
      %c0_114 = arith.constant 0 : index
      %c24_115 = arith.constant 24 : index
      %230 = vector.load %arg13[%c0_114, %c24_115] : memref<16x32xf32, #tpu.memory_space<vmem>>, vector<16x8xf32>
      tpu.vector_store %arg13[%c0_114, %c24_115], %229 {strides = array<i32>} : memref<16x32xf32, #tpu.memory_space<vmem>>, vector<16x8xf32>,
      %c0_116 = arith.constant 0 : index
      %c0_117 = arith.constant 0 : index
      %231 = vector.load %arg13[%c0_116, %c0_117] : memref<16x32xf32, #tpu.memory_space<vmem>>, vector<16x32xf32>
      %232 = arith.truncf %231 : vector<16x32xf32> to vector<16x32xbf16>
      %c0_118 = arith.constant 0 : index
      %c0_119 = arith.constant 0 : index
      %233 = vector.load %arg8[%c0_118, %c0_119] : memref<32x32xbf16, #tpu.memory_space<vmem>>, vector<32x32xbf16>
      %cst_120 = arith.constant dense<0.000000e+00> : vector<16x32xf32>
      %234 = tpu.matmul %232, %233, %cst_120 {dimension_numbers = #tpu.dot_dimension_numbers<[1], [0], [0], [1], [0, 0, 1, 1], [], []>} : vector<16x32xbf16>, vector<32x32xbf16>, vector<16x32xf32> -> vector<16x32xf32>
      %c0_121 = arith.constant 0 : index
      %c0_122 = arith.constant 0 : index
      %c0_123 = arith.constant 0 : index
      %235 = vector.load %arg10[%c0_121, %c0_122, %c0_123] : memref<1x16x32xf32, #tpu.memory_space<vmem>>, vector<1x16x32xf32>
      %236 = vector.shape_cast %235 : vector<1x16x32xf32> to vector<16x32xf32>
      %237 = vector.shape_cast %234 : vector<16x32xf32> to vector<1x16x32xf32>
      tpu.vector_store %arg10[%c0_121, %c0_122, %c0_123], %237 {strides = array<i32>} : memref<1x16x32xf32, #tpu.memory_space<vmem>>, vector<1x16x32xf32>,
    } else {
    }
    return
  }
  func.func @transform_0(%arg0: i32, %arg1: i32, %arg2: i32) -> (i32, i32, i32) {
    %c0_i32 = arith.constant 0 : i32
    %c0_i32_0 = arith.constant 0 : i32
    return %arg0, %arg1, %c0_i32 : i32, i32, i32
  }
  func.func @transform_1(%arg0: i32, %arg1: i32, %arg2: i32) -> (i32, i32, i32) {
    %c0_i32 = arith.constant 0 : i32
    %c0_i32_0 = arith.constant 0 : i32
    return %arg0, %arg2, %c0_i32 : i32, i32, i32
  }
  func.func @transform_2(%arg0: i32, %arg1: i32, %arg2: i32) -> (i32, i32, i32) {
    %c0_i32 = arith.constant 0 : i32
    %c0_i32_0 = arith.constant 0 : i32
    return %arg0, %arg2, %c0_i32 : i32, i32, i32
  }
  func.func @transform_3(%arg0: i32, %arg1: i32, %arg2: i32) -> (i32, i32, i32) {
    %c0_i32 = arith.constant 0 : i32
    %c0_i32_0 = arith.constant 0 : i32
    %c0_i32_1 = arith.constant 0 : i32
    return %arg0, %c0_i32, %c0_i32_0 : i32, i32, i32
  }
  func.func @transform_4(%arg0: i32, %arg1: i32, %arg2: i32) -> (i32, i32, i32) {
    %c0_i32 = arith.constant 0 : i32
    %c0_i32_0 = arith.constant 0 : i32
    %c0_i32_1 = arith.constant 0 : i32
    return %arg0, %c0_i32, %c0_i32_0 : i32, i32, i32
  }
  func.func @transform_5(%arg0: i32, %arg1: i32, %arg2: i32) -> (i32, i32) {
    %c0_i32 = arith.constant 0 : i32
    %c0_i32_0 = arith.constant 0 : i32
    %c0_i32_1 = arith.constant 0 : i32
    return %c0_i32, %c0_i32_0 : i32, i32
  }
  func.func @transform_6(%arg0: i32, %arg1: i32, %arg2: i32) -> (i32, i32) {
    %c0_i32 = arith.constant 0 : i32
    %c0_i32_0 = arith.constant 0 : i32
    %c0_i32_1 = arith.constant 0 : i32
    return %c0_i32, %c0_i32_0 : i32, i32
  }
  func.func @transform_7(%arg0: i32, %arg1: i32, %arg2: i32) -> (i32, i32, i32) {
    %c0_i32 = arith.constant 0 : i32
    %c0_i32_0 = arith.constant 0 : i32
    return %arg0, %arg1, %c0_i32 : i32, i32, i32
  }
}

</mosaic_0001>

<llo_original>
// kernel: tpu_custom_call.1
$region0: #{tpu_custom_call.1}
  #allocation0 [shape = 'u32[]', space=smem, size = 0x4, offset = 0x4, fixed_abs, tag = 'smem constant byte address 0x4 - core index']
  #allocation1 [shape = 'u32[144,128]{1,0:T(1,128)}', space=vmem, size = 0x12000, scoped, tag = 'internal scratch']
  #allocation2 [shape = 'f32[16,128]{1,0:T(8,128)}', space=vmem, size = 0x2000, scoped, tag = 'scratch operand']
  #allocation3 [shape = 'f32[16,128]{1,0:T(8,128)}', space=vmem, size = 0x2000, scoped, tag = 'scratch operand']
  #allocation4 [shape = 'f32[16,32]{1,0:T(8,128)}', space=vmem, size = 0x2000, scoped, tag = 'scratch operand']
  %s0 = inlined_call_operand.hbm [shape: bf16[2,32,32], index: 0, kind: input, shape index: {}]
  %s1 = inlined_call_operand.hbm [shape: bf16[2,32,32], index: 1, kind: input, shape index: {}]
  %s2 = inlined_call_operand.hbm [shape: bf16[2,32,32], index: 2, kind: input, shape index: {}]
  %s3 = inlined_call_operand.hbm [shape: bf16[2,8,32], index: 3, kind: input, shape index: {}]
  %s4 = inlined_call_operand.vmem [shape: f32[2,1,32], index: 4, kind: input, shape index: {}]
  %s5 = inlined_call_operand.vmem [shape: bf16[32,32], index: 5, kind: input, shape index: {}]
  %s6 = inlined_call_operand.vmem [shape: f32[1,32], index: 6, kind: input, shape index: {}]
  %s7 = inlined_call_operand.hbm [shape: f32[2,32,32], index: 7, kind: output, shape index: {}]
  %s8 = sld [smem:[#allocation0]]
  $region85: #{tpu_custom_call.1} parent=0
    _
  %s10 = ssub.s32 1, %s8
  %s11 = scalar_select 0, %s10, %s8
  $region1: #{tpu_custom_call.1} parent=0
    #allocation5 [shape = 'u8[8192]{0}', space=vmem, size = 0x2000, scoped, tag = 'input window, operand 0']
    #allocation6 [shape = 's32[2]{0}', space=sflag, size = 0x8, scoped, tag = 'scoped memory for tpu_custom_call.1']
    #allocation7 [shape = 's32[2]{0}', space=sflag, size = 0x8, scoped, tag = 'scoped memory for tpu_custom_call.1']
    #allocation8 [shape = 'u8[8192]{0}', space=vmem, size = 0x2000, scoped, tag = 'input window, operand 1']
    #allocation9 [shape = 's32[2]{0}', space=sflag, size = 0x8, scoped, tag = 'scoped memory for tpu_custom_call.1']
    #allocation10 [shape = 'u8[8192]{0}', space=vmem, size = 0x2000, scoped, tag = 'input window, operand 2']
    #allocation11 [shape = 'u8[4096]{0}', space=vmem, size = 0x1000, scoped, tag = 'input window, operand 3']
    #allocation12 [shape = 's32[2]{0}', space=sflag, size = 0x8, scoped, tag = 'scoped memory for tpu_custom_call.1']
    #allocation13 [shape = 'u8[16384]{0}', space=vmem, size = 0x4000, scoped, tag = 'output window, operand 0']
    %12 = vsyncpa [#allocation6], 0
    %s13 = scalar_lea.sflag [#allocation6], 1
    %14 = vsyncpa %s13, 0
    %15 = vsyncpa [#allocation9], 0
    %s16 = scalar_lea.sflag [#allocation9], 1
    %17 = vsyncpa %s16, 0
    %18 = vsyncpa [#allocation12], 0
    %s19 = scalar_lea.sflag [#allocation12], 1
    %20 = vsyncpa %s19, 0
    %21 = vsyncpa [#allocation7], 0
    %s22 = scalar_lea.sflag [#allocation7], 1
    %23 = vsyncpa %s22, 0
    loop: start=0, step=1, limit=10
    $region2: #{tpu_custom_call.1} parent=1 // loop_pre_header
      _
    $region3: #{tpu_custom_call.1} parent=1 // loop_header
      %s25 = sphi 0, %s29
      %p26 = scmp.ge.s32.totalorder %s25, 10
      %s32 = sphi 0, %s51
      %s33 = sphi 0, %s47
      %s34 = sphi 0, %s43
      %s35 = sphi 0, %s32
      %s36 = sphi 0, %s33
      %s37 = sphi 0, %s34
      %s38 = sphi 0, %s35
      %s39 = sphi 0, %s36
      %s40 = sphi 0, %s37
      %s56 = sphi 0, %s58
      %s59 = sphi 0, %s56
      %s60 = sphi 0, %s59
      %s76 = sphi 0, %s60
      %s84 = sphi 0, %s86
      %s87 = sphi 0, %s84
      %s88 = sphi 0, %s87
      %s104 = sphi 0, %s88
      %s112 = sphi 0, %s114
      %s115 = sphi 0, %s112
      %s116 = sphi 0, %s115
      %s132 = sphi 0, %s116
      %s138 = sphi 0, %s140
      %s141 = sphi 0, %s138
      %s142 = sphi 0, %s141
      %s158 = sphi 0, %s142
      %s164 = sphi 0, %s166
      %s167 = sphi 0, %s164
      %s168 = sphi 0, %s167
      %s184 = sphi 0, %s168
      %s188 = sphi 0, %s188
      %s190 = sphi 0, %s188
      %s191 = sphi 0, %s190
      %s205 = sphi 0, %s191
      %s209 = sphi 0, %s209
      %s211 = sphi 0, %s209
      %s212 = sphi 0, %s211
      %s226 = sphi 0, %s212
      %s234 = sphi 0, %s236
      %s237 = sphi 0, %s234
      %s238 = sphi 0, %s237
      %s254 = sphi 0, %s238
    $region4: #{tpu_custom_call.1} parent=1 // loop_header_branch
      %28 = sbr.rel (%p26) target = $region8
    $region5: #{tpu_custom_call.1} parent=1 // loop_body
      %s30 = ssub.s32 %s25, 1
      %s31 = ssub.s32 %s25, 2
      %s41 = sadd.s32 1, %s34
      %p42 = scmp.ge.s32.totalorder %s41, 2
      %s43 = scalar_select %p42, 0, %s41
      %s44 = sadd.s32 1, %s33
      %s45 = scalar_select %p42, %s44, %s33
      %p46 = scmp.ge.s32.totalorder %s45, 2
      %s47 = scalar_select %p46, 0, %s45
      %s48 = sadd.s32 1, %s32
      %s49 = scalar_select %p46, %s48, %s32
      %p50 = scmp.ge.s32.totalorder %s49, 2
      %s51 = scalar_select %p50, 0, %s49
      %s52 = ssub.s32 %s32, %s51
      %s53 = ssub.s32 %s33, %s47
      %s54 = sor.u32 %s52, %s53
      %p55 = scmp.eq.s32.totalorder %s54, 0
      %s57 = sadd.s32 %s56, 1
      %s58 = scalar_select %p55, %s56, %s57
      %p61 = pneg %p55
      %p62 = scmp.eq.s32.totalorder %s25, 7
      %p63 = por %p61, %p62
      %p64 = scmp.ne.s32.totalorder %s56, %s59
      %p65 = scmp.eq.s32.totalorder %s25, 0
      %p66 = por %p64, %p65
      %p67 = scmp.ne.s32.totalorder %s56, %s59
      %p68 = scmp.eq.s32.totalorder %s30, 7
      %p69 = por %p67, %p68
      %p70 = scmp.ne.s32.totalorder %s59, %s60
      %p71 = scmp.eq.s32.totalorder %s30, 0
      %p72 = por %p70, %p71
      %p73 = scmp.ne.s32.totalorder %s59, %s60
      %p74 = scmp.eq.s32.totalorder %s31, 7
      %p75 = por %p73, %p74
      %p77 = scmp.ne.s32.totalorder %s60, %s76
      %p78 = scmp.eq.s32.totalorder %s31, 0
      %p79 = por %p77, %p78
      %s80 = ssub.s32 %s32, %s51
      %s81 = ssub.s32 %s34, %s43
      %s82 = sor.u32 %s80, %s81
      %p83 = scmp.eq.s32.totalorder %s82, 0
      %s85 = sadd.s32 %s84, 1
      %s86 = scalar_select %p83, %s84, %s85
      %p89 = pneg %p83
      %p90 = scmp.eq.s32.totalorder %s25, 7
      %p91 = por %p89, %p90
      %p92 = scmp.ne.s32.totalorder %s84, %s87
      %p93 = scmp.eq.s32.totalorder %s25, 0
      %p94 = por %p92, %p93
      %p95 = scmp.ne.s32.totalorder %s84, %s87
      %p96 = scmp.eq.s32.totalorder %s30, 7
      %p97 = por %p95, %p96
      %p98 = scmp.ne.s32.totalorder %s87, %s88
      %p99 = scmp.eq.s32.totalorder %s30, 0
      %p100 = por %p98, %p99
      %p101 = scmp.ne.s32.totalorder %s87, %s88
      %p102 = scmp.eq.s32.totalorder %s31, 7
      %p103 = por %p101, %p102
      %p105 = scmp.ne.s32.totalorder %s88, %s104
      %p106 = scmp.eq.s32.totalorder %s31, 0
      %p107 = por %p105, %p106
      %s108 = ssub.s32 %s32, %s51
      %s109 = ssub.s32 %s34, %s43
      %s110 = sor.u32 %s108, %s109
      %p111 = scmp.eq.s32.totalorder %s110, 0
      %s113 = sadd.s32 %s112, 1
      %s114 = scalar_select %p111, %s112, %s113
      %p117 = pneg %p111
      %p118 = scmp.eq.s32.totalorder %s25, 7
      %p119 = por %p117, %p118
      %p120 = scmp.ne.s32.totalorder %s112, %s115
      %p121 = scmp.eq.s32.totalorder %s25, 0
      %p122 = por %p120, %p121
      %p123 = scmp.ne.s32.totalorder %s112, %s115
      %p124 = scmp.eq.s32.totalorder %s30, 7
      %p125 = por %p123, %p124
      %p126 = scmp.ne.s32.totalorder %s115, %s116
      %p127 = scmp.eq.s32.totalorder %s30, 0
      %p128 = por %p126, %p127
      %p129 = scmp.ne.s32.totalorder %s115, %s116
      %p130 = scmp.eq.s32.totalorder %s31, 7
      %p131 = por %p129, %p130
      %p133 = scmp.ne.s32.totalorder %s116, %s132
      %p134 = scmp.eq.s32.totalorder %s31, 0
      %p135 = por %p133, %p134
      %s136 = ssub.s32 %s32, %s51
      %p137 = scmp.eq.s32.totalorder %s136, 0
      %s139 = sadd.s32 %s138, 1
      %s140 = scalar_select %p137, %s138, %s139
      %p143 = pneg %p137
      %p144 = scmp.eq.s32.totalorder %s25, 7
      %p145 = por %p143, %p144
      %p146 = scmp.ne.s32.totalorder %s138, %s141
      %p147 = scmp.eq.s32.totalorder %s25, 0
      %p148 = por %p146, %p147
      %p149 = scmp.ne.s32.totalorder %s138, %s141
      %p150 = scmp.eq.s32.totalorder %s30, 7
      %p151 = por %p149, %p150
      %p152 = scmp.ne.s32.totalorder %s141, %s142
      %p153 = scmp.eq.s32.totalorder %s30, 0
      %p154 = por %p152, %p153
      %p155 = scmp.ne.s32.totalorder %s141, %s142
      %p156 = scmp.eq.s32.totalorder %s31, 7
      %p157 = por %p155, %p156
      %p159 = scmp.ne.s32.totalorder %s142, %s158
      %p160 = scmp.eq.s32.totalorder %s31, 0
      %p161 = por %p159, %p160
      %s162 = ssub.s32 %s32, %s51
      %p163 = scmp.eq.s32.totalorder %s162, 0
      %s165 = sadd.s32 %s164, 1
      %s166 = scalar_select %p163, %s164, %s165
      %p169 = pneg %p163
      %p170 = scmp.eq.s32.totalorder %s25, 7
      %p171 = por %p169, %p170
      %p172 = scmp.ne.s32.totalorder %s164, %s167
      %p173 = scmp.eq.s32.totalorder %s25, 0
      %p174 = por %p172, %p173
      %p175 = scmp.ne.s32.totalorder %s164, %s167
      %p176 = scmp.eq.s32.totalorder %s30, 7
      %p177 = por %p175, %p176
      %p178 = scmp.ne.s32.totalorder %s167, %s168
      %p179 = scmp.eq.s32.totalorder %s30, 0
      %p180 = por %p178, %p179
      %p181 = scmp.ne.s32.totalorder %s167, %s168
      %p182 = scmp.eq.s32.totalorder %s31, 7
      %p183 = por %p181, %p182
      %p185 = scmp.ne.s32.totalorder %s168, %s184
      %p186 = scmp.eq.s32.totalorder %s31, 0
      %p187 = por %p185, %p186
      %s189 = sadd.s32 %s188, 1
      %p192 = scmp.eq.s32.totalorder %s25, 7
      %p193 = scmp.ne.s32.totalorder %s188, %s190
      %p194 = scmp.eq.s32.totalorder %s25, 0
      %p195 = por %p193, %p194
      %p196 = scmp.ne.s32.totalorder %s188, %s190
      %p197 = scmp.eq.s32.totalorder %s30, 7
      %p198 = por %p196, %p197
      %p199 = scmp.ne.s32.totalorder %s190, %s191
      %p200 = scmp.eq.s32.totalorder %s30, 0
      %p201 = por %p199, %p200
      %p202 = scmp.ne.s32.totalorder %s190, %s191
      %p203 = scmp.eq.s32.totalorder %s31, 7
      %p204 = por %p202, %p203
      %p206 = scmp.ne.s32.totalorder %s191, %s205
      %p207 = scmp.eq.s32.totalorder %s31, 0
      %p208 = por %p206, %p207
      %s210 = sadd.s32 %s209, 1
      %p213 = scmp.eq.s32.totalorder %s25, 7
      %p214 = scmp.ne.s32.totalorder %s209, %s211
      %p215 = scmp.eq.s32.totalorder %s25, 0
      %p216 = por %p214, %p215
      %p217 = scmp.ne.s32.totalorder %s209, %s211
      %p218 = scmp.eq.s32.totalorder %s30, 7
      %p219 = por %p217, %p218
      %p220 = scmp.ne.s32.totalorder %s211, %s212
      %p221 = scmp.eq.s32.totalorder %s30, 0
      %p222 = por %p220, %p221
      %p223 = scmp.ne.s32.totalorder %s211, %s212
      %p224 = scmp.eq.s32.totalorder %s31, 7
      %p225 = por %p223, %p224
      %p227 = scmp.ne.s32.totalorder %s212, %s226
      %p228 = scmp.eq.s32.totalorder %s31, 0
      %p229 = por %p227, %p228
      %s230 = ssub.s32 %s32, %s51
      %s231 = ssub.s32 %s33, %s47
      %s232 = sor.u32 %s230, %s231
      %p233 = scmp.eq.s32.totalorder %s232, 0
      %s235 = sadd.s32 %s234, 1
      %s236 = scalar_select %p233, %s234, %s235
      %p239 = pneg %p233
      %p240 = scmp.eq.s32.totalorder %s25, 7
      %p241 = por %p239, %p240
      %p242 = scmp.ne.s32.totalorder %s234, %s237
      %p243 = scmp.eq.s32.totalorder %s25, 0
      %p244 = por %p242, %p243
      %p245 = scmp.ne.s32.totalorder %s234, %s237
      %p246 = scmp.eq.s32.totalorder %s30, 7
      %p247 = por %p245, %p246
      %p248 = scmp.ne.s32.totalorder %s237, %s238
      %p249 = scmp.eq.s32.totalorder %s30, 0
      %p250 = por %p248, %p249
      %p251 = scmp.ne.s32.totalorder %s237, %s238
      %p252 = scmp.eq.s32.totalorder %s31, 7
      %p253 = por %p251, %p252
      %p255 = scmp.ne.s32.totalorder %s238, %s254
      %p256 = scmp.eq.s32.totalorder %s31, 0
      %p257 = por %p255, %p256
      %p258 = scmp.le.s32.totalorder 1, %s25
      %p259 = scmp.lt.s32.totalorder %s25, 9
      %p260 = pnand %p258, %p259
      %p261 = pneg %p260
      // Predicated region
      $region9: #{tpu_custom_call.1} parent=5 // pred_check
        _
      $region10: #{tpu_custom_call.1} parent=5 // pred_check_branch
        %263 = sbr.rel (%p260) target = $region12
      $region11: #{tpu_custom_call.1} parent=5 // pred_region
        %s264 = ssub.s32 %s25, 1
        // Predicated region
        $region13: #{tpu_custom_call.1} parent=11 // pred_check
          %p265 = pneg %p201
        $region14: #{tpu_custom_call.1} parent=11 // pred_check_branch
          %267 = sbr.rel (%p265) target = $region16
        $region15: #{tpu_custom_call.1} parent=11 // pred_region
          _
        $region16: #{tpu_custom_call.1} parent=11 // pred_fallthru
          _
        // Predicated region
        $region17: #{tpu_custom_call.1} parent=11 // pred_check
          %p268 = pneg %p222
        $region18: #{tpu_custom_call.1} parent=11 // pred_check_branch
          %270 = sbr.rel (%p268) target = $region20
        $region19: #{tpu_custom_call.1} parent=11 // pred_region
          _
        $region20: #{tpu_custom_call.1} parent=11 // pred_fallthru
          _
      $region12: #{tpu_custom_call.1} parent=5 // pred_fallthru
        _
      %p271 = scmp.lt.s32.totalorder %s25, 8
      // Predicated region
      $region21: #{tpu_custom_call.1} parent=5 // pred_check
        %p272 = pneg %p271
      $region22: #{tpu_custom_call.1} parent=5 // pred_check_branch
        %274 = sbr.rel (%p272) target = $region24
      $region23: #{tpu_custom_call.1} parent=5 // pred_region
        // Predicated region
        $region25: #{tpu_custom_call.1} parent=23 // pred_check
          %p275 = pneg %p66
        $region26: #{tpu_custom_call.1} parent=23 // pred_check_branch
          %277 = sbr.rel (%p275) target = $region28
        $region27: #{tpu_custom_call.1} parent=23 // pred_region
          %s278 = sand.u32 %s56, 1
          %s279 = scalar_lea.sflag [#allocation6], %s278
          %s280 = sand.u32 %s56, 1
          %s281 = smul.addr %s280, 8
          %s282 = scalar_lea.vmem [#allocation5], %s281
          %s283 = smul.u32 2, %s33
          %s285 = ssub.s32 128, 128
          %286 = vsyncadd %s279, %s285
          %s287 = smul.addr %s32, 4
          %s288 = sadd.s32 %s283, %s287
          %s289 = smul.addr %s288, 64
          %s290 = scalar_lea.hbm %s0, %s289
          %s291 = sshll.u32 %s282, 4
          %s292 = int_to_ptr.vmem [resolvable:$true] %s291
          %297 = dma.hbm_to_vmem [thread:$0]  %s290, 128, %s292, %s279, 64, 64, 4
        $region28: #{tpu_custom_call.1} parent=23 // pred_fallthru
          _
        // Predicated region
        $region29: #{tpu_custom_call.1} parent=23 // pred_check
          %p298 = pneg %p94
        $region30: #{tpu_custom_call.1} parent=23 // pred_check_branch
          %300 = sbr.rel (%p298) target = $region32
        $region31: #{tpu_custom_call.1} parent=23 // pred_region
          %s301 = sand.u32 %s25, 1
          %s302 = scalar_lea.sflag [#allocation9], %s301
          %s303 = sand.u32 %s84, 1
          %s304 = smul.addr %s303, 8
          %s305 = scalar_lea.vmem [#allocation8], %s304
          %s306 = smul.u32 2, %s34
          %s308 = ssub.s32 128, 128
          %309 = vsyncadd %s302, %s308
          %s310 = smul.addr %s32, 4
          %s311 = sadd.s32 %s306, %s310
          %s312 = smul.addr %s311, 64
          %s313 = scalar_lea.hbm %s1, %s312
          %s314 = sshll.u32 %s305, 4
          %s315 = int_to_ptr.vmem [resolvable:$true] %s314
          %320 = dma.hbm_to_vmem [thread:$0]  %s313, 128, %s315, %s302, 64, 64, 4
        $region32: #{tpu_custom_call.1} parent=23 // pred_fallthru
          _
        // Predicated region
        $region33: #{tpu_custom_call.1} parent=23 // pred_check
          %p321 = pneg %p122
        $region34: #{tpu_custom_call.1} parent=23 // pred_check_branch
          %323 = sbr.rel (%p321) target = $region36
        $region35: #{tpu_custom_call.1} parent=23 // pred_region
          %s324 = sand.u32 %s25, 1
          %s325 = scalar_lea.sflag [#allocation9], %s324
          %s326 = sand.u32 %s112, 1
          %s327 = smul.addr %s326, 8
          %s328 = scalar_lea.vmem [#allocation10], %s327
          %s329 = smul.u32 2, %s34
          %s331 = ssub.s32 128, 128
          %332 = vsyncadd %s325, %s331
          %s333 = smul.addr %s32, 4
          %s334 = sadd.s32 %s329, %s333
          %s335 = smul.addr %s334, 64
          %s336 = scalar_lea.hbm %s2, %s335
          %s337 = sshll.u32 %s328, 4
          %s338 = int_to_ptr.vmem [resolvable:$true] %s337
          %343 = dma.hbm_to_vmem [thread:$0]  %s336, 128, %s338, %s325, 64, 64, 4
        $region36: #{tpu_custom_call.1} parent=23 // pred_fallthru
          _
        // Predicated region
        $region37: #{tpu_custom_call.1} parent=23 // pred_check
          %p344 = pneg %p148
        $region38: #{tpu_custom_call.1} parent=23 // pred_check_branch
          %346 = sbr.rel (%p344) target = $region40
        $region39: #{tpu_custom_call.1} parent=23 // pred_region
          %s347 = sand.u32 %s138, 1
          %s348 = scalar_lea.sflag [#allocation12], %s347
          %s349 = sand.u32 %s138, 1
          %s350 = smul.addr %s349, 4
          %s351 = scalar_lea.vmem [#allocation11], %s350
          %s353 = ssub.s32 64, 64
          %354 = vsyncadd %s348, %s353
          %s355 = smul.addr %s32, 64
          %s356 = scalar_lea.hbm %s3, %s355
          %s358 = sshll.u32 %s351, 4
          %s359 = int_to_ptr.vmem [resolvable:$true] %s358
          %361 = dma.hbm_to_vmem [thread:$0]  %s356, 64, %s359, %s348
        $region40: #{tpu_custom_call.1} parent=23 // pred_fallthru
          _
        // Predicated region
        $region41: #{tpu_custom_call.1} parent=23 // pred_check
          %p362 = pneg %p174
        $region42: #{tpu_custom_call.1} parent=23 // pred_check_branch
          %364 = sbr.rel (%p362) target = $region44
        $region43: #{tpu_custom_call.1} parent=23 // pred_region
          %p365 = scmp.lt.s32.totalorder %s32, 1
          %s366 = scalar_select %p365, %s32, 1
          %s367 = scalar_lea.vmem %s4, %s366
        $region44: #{tpu_custom_call.1} parent=23 // pred_fallthru
          _
      $region24: #{tpu_custom_call.1} parent=5 // pred_fallthru
        _
      %p368 = scmp.le.s32.totalorder 1, %s25
      %p369 = scmp.lt.s32.totalorder %s25, 9
      %p370 = pnand %p368, %p369
      %p371 = pneg %p370
      // Predicated region
      $region45: #{tpu_custom_call.1} parent=5 // pred_check
        _
      $region46: #{tpu_custom_call.1} parent=5 // pred_check_branch
        %373 = sbr.rel (%p370) target = $region48
      $region47: #{tpu_custom_call.1} parent=5 // pred_region
        %s374 = ssub.s32 %s25, 1
        %s375 = sand.u32 %s59, 1
        %s376 = scalar_lea.sflag [#allocation6], %s375
        %s377 = sand.u32 %s59, 1
        %s378 = smul.addr %s377, 8
        %s379 = scalar_lea.vmem [#allocation5], %s378
        // Predicated region
        $region49: #{tpu_custom_call.1} parent=47 // pred_check
          %p380 = pneg %p72
        $region50: #{tpu_custom_call.1} parent=47 // pred_check_branch
          %382 = sbr.rel (%p380) target = $region52
        $region51: #{tpu_custom_call.1} parent=47 // pred_region
          %383 = dma.done %s376, 128
        $region52: #{tpu_custom_call.1} parent=47 // pred_fallthru
          _
        %s384 = sand.u32 %s30, 1
        %s385 = scalar_lea.sflag [#allocation9], %s384
        %s386 = sand.u32 %s87, 1
        %s387 = smul.addr %s386, 8
        %s388 = scalar_lea.vmem [#allocation8], %s387
        // Predicated region
        $region53: #{tpu_custom_call.1} parent=47 // pred_check
          %p389 = pneg %p100
        $region54: #{tpu_custom_call.1} parent=47 // pred_check_branch
          %391 = sbr.rel (%p389) target = $region56
        $region55: #{tpu_custom_call.1} parent=47 // pred_region
          %392 = dma.done %s385, 128
        $region56: #{tpu_custom_call.1} parent=47 // pred_fallthru
          _
        %s393 = sand.u32 %s30, 1
        %s394 = scalar_lea.sflag [#allocation9], %s393
        %s395 = sand.u32 %s115, 1
        %s396 = smul.addr %s395, 8
        %s397 = scalar_lea.vmem [#allocation10], %s396
        // Predicated region
        $region57: #{tpu_custom_call.1} parent=47 // pred_check
          %p398 = pneg %p128
        $region58: #{tpu_custom_call.1} parent=47 // pred_check_branch
          %400 = sbr.rel (%p398) target = $region60
        $region59: #{tpu_custom_call.1} parent=47 // pred_region
          %401 = dma.done %s394, 128
        $region60: #{tpu_custom_call.1} parent=47 // pred_fallthru
          _
        %s402 = sand.u32 %s141, 1
        %s403 = scalar_lea.sflag [#allocation12], %s402
        %s404 = sand.u32 %s141, 1
        %s405 = smul.addr %s404, 4
        %s406 = scalar_lea.vmem [#allocation11], %s405
        // Predicated region
        $region61: #{tpu_custom_call.1} parent=47 // pred_check
          %p407 = pneg %p154
        $region62: #{tpu_custom_call.1} parent=47 // pred_check_branch
          %409 = sbr.rel (%p407) target = $region64
        $region63: #{tpu_custom_call.1} parent=47 // pred_region
          %410 = dma.done %s403, 64
        $region64: #{tpu_custom_call.1} parent=47 // pred_fallthru
          _
        %s411 = sand.u32 %s59, 1
        %s412 = scalar_lea.sflag [#allocation6], %s411
        %s413 = sand.u32 %s59, 1
        %s414 = smul.addr %s413, 8
        %s415 = scalar_lea.vmem [#allocation5], %s414
        %p416 = pneg %p72
        %p417 = pneg %p69
        %s418 = sand.u32 %s30, 1
        %s419 = scalar_lea.sflag [#allocation9], %s418
        %s420 = sand.u32 %s87, 1
        %s421 = smul.addr %s420, 8
        %s422 = scalar_lea.vmem [#allocation8], %s421
        %p423 = pneg %p100
        %p424 = pneg %p97
        %s425 = sand.u32 %s30, 1
        %s426 = scalar_lea.sflag [#allocation9], %s425
        %s427 = sand.u32 %s115, 1
        %s428 = smul.addr %s427, 8
        %s429 = scalar_lea.vmem [#allocation10], %s428
        %p430 = pneg %p128
        %p431 = pneg %p125
        %s432 = sand.u32 %s141, 1
        %s433 = scalar_lea.sflag [#allocation12], %s432
        %s434 = sand.u32 %s141, 1
        %s435 = smul.addr %s434, 4
        %s436 = scalar_lea.vmem [#allocation11], %s435
        %p437 = pneg %p154
        %p438 = pneg %p151
        %p439 = scmp.lt.s32.totalorder %s35, 1
        %s440 = scalar_select %p439, %s35, 1
        %s441 = scalar_lea.vmem %s4, %s440
        %p442 = pneg %p180
        %p443 = pneg %p177
        %p444 = pneg %p201
        %p445 = pneg %p198
        %p446 = pneg %p222
        %p447 = pneg %p219
        %p448 = pneg %p250
        %p449 = pneg %p247
        %s450 = sand.u32 %s237, 1
        %s451 = scalar_lea.sflag [#allocation7], %s450
        %s452 = sand.u32 %s237, 1
        %s453 = smul.addr %s452, 16
        %s454 = scalar_lea.vmem [#allocation13], %s453
        %s455 = smul.u32 2, %s36
        %s456 = smul.u32 2, %s37
        %s457 = smul.u32 2, %s37
        %p458 = scmp.lt.s32.totalorder %s35, 1
        %s459 = scalar_select %p458, %s35, 1
        %s460 = scalar_lea.vmem %s4, %s459
        %s461 = smul.u32 2, %s36
        %p463 = scmp.eq.s32.totalorder %s37, 0
        // Predicated region
        $region65: #{tpu_custom_call.1} parent=47 // pred_check
          %p464 = pneg %p463
        $region66: #{tpu_custom_call.1} parent=47 // pred_check_branch
          %466 = sbr.rel (%p464) target = $region68
        $region67: #{tpu_custom_call.1} parent=47 // pred_region
          %467 = vst [vmem:[#allocation2] sm:$0xff] -inf
          %468 = vst [vmem:[#allocation2 + $0x8] sm:$0xff] -inf
          %469 = vst [vmem:[#allocation3] sm:$0xff] 0.0
          %470 = vst [vmem:[#allocation3 + $0x8] sm:$0xff] 0.0
          %vm471 = vcmask 261120
          %472 = vst.msk [vmem:[#allocation4] sm:$0xff] %vm471, 0.0
          %473 = vst.msk [vmem:[#allocation4 + $0x8] sm:$0xff] %vm471, 0.0
        $region68: #{tpu_custom_call.1} parent=47 // pred_fallthru
          _
        %v474 = vld [vmem:[%s379] sm:$0xf]
        %v475 = vld [vmem:[%s379 + $0x4] sm:$0xf]
        %v476 = vld [vmem:[%s388] sm:$0xf]
        %v477 = vld [vmem:[%s388 + $0x4] sm:$0xf]
        %v478 = vld [vmem:[%s397] sm:$0xf]
        %v479 = vld [vmem:[%s397 + $0x4] sm:$0xf]
        %v482 = vunpack.c.l.b16 %v474
        %v483 = vunpack.c.l.b16 %v475
        %v484 = vpack.c.b16 %v483, %v482
        %v487 = vunpack.c.l.b16 %v476
        %v488 = vunpack.c.l.b16 %v477
        %v489 = vpack.c.b16 %v488, %v487
        %vm490 = vcmask 64512
        %v492 = vsel %vm490, %v484, 0
        %v495 = vsel %vm490, %v489, 0
        %497 = vmatprep.subr.bf16.mxu0 0
        %498 = vmatpush1.bf16.xpose.msra.mxu0 %v495
        %499 = vmatprep.subr.bf16.mxu0 0
        %500 = vmatpush1.bf16.xpose.msra.mxu0 0
        %501 = vmatprep.subr.bf16.mxu0 0
        %502 = vmatpush1.bf16.xpose.msra.mxu0 0
        %503 = vmatprep.subr.bf16.mxu0 0
        %504 = vmatpush1.bf16.xpose.msra.mxu0 0
        %505 = vmatprep.subr.bf16.mxu0 0
        %506 = vmatpush1.bf16.xpose.msra.mxu0 0
        %507 = vmatprep.subr.bf16.mxu0 0
        %508 = vmatpush1.bf16.xpose.msra.mxu0 0
        %509 = vmatprep.subr.bf16.mxu0 0
        %510 = vmatpush1.bf16.xpose.msra.mxu0 0
        %511 = vmatprep.subr.bf16.mxu0 0
        %512 = vmatpush1.bf16.xpose.msra.mxu0 0
        %513 = vmatprep.subr.bf16.mxu0 0
        %514 = vmatpush1.bf16.xpose.msra.mxu0 0
        %515 = vmatprep.subr.bf16.mxu0 0
        %516 = vmatpush1.bf16.xpose.msra.mxu0 0
        %517 = vmatprep.subr.bf16.mxu0 0
        %518 = vmatpush1.bf16.xpose.msra.mxu0 0
        %519 = vmatprep.subr.bf16.mxu0 0
        %520 = vmatpush1.bf16.xpose.msra.mxu0 0
        %521 = vmatprep.subr.bf16.mxu0 0
        %522 = vmatpush1.bf16.xpose.msra.mxu0 0
        %523 = vmatprep.subr.bf16.mxu0 0
        %524 = vmatpush1.bf16.xpose.msra.mxu0 0
        %525 = vmatprep.subr.bf16.mxu0 0
        %526 = vmatpush1.bf16.xpose.msra.mxu0 0
        %527 = vmatprep.subr.bf16.mxu0 0
        %528 = vmatpush1.bf16.xpose.msra.mxu0 0
        %529 = vmatprep.mubr.bf16.mxu0 0
        %530 = vmatmul.mubr.bf16.gmra.mrb[0].mxu0 %v492
        %v531 = vpop.f32.mrb[0].mxu0
        %v532 = vadd.f32 0.0, %v531
        %v533 = vpop.f32.mrb[0].mxu0
        %v534 = vpop.f32.mrb[0].mxu0
        %v535 = vadd.f32 0.0, %v534
        %v536 = vpop.f32.mrb[0].mxu0
        %537 = vdwg.mxu0
        %v538 = vld [vmem:[#allocation2] sm:$0xff]
        %v539 = vld [vmem:[#allocation2 + $0x8] sm:$0xff]
        %v540 = vld [vmem:[#allocation3] sm:$0xff]
        %v541 = vld [vmem:[#allocation3 + $0x8] sm:$0xff]
        %vm542 = vcmask 130048
        %v543 = vsel %vm542, %v532, -inf
        %544 = vmax.xlane.f32.xlu0 %v543
        %v545 = vpop.xlane.xlu0 %544
        %v546 = vsel %vm542, %v535, -inf
        %547 = vmax.xlane.f32.xlu0 %v546
        %v548 = vpop.xlane.xlu0 %547
        %v549 = vmax.f32 %v538, %v545
        %v550 = vmax.f32 %v539, %v548
        %v551 = vsub.f32 %v538, %v549
        %v552 = vsub.f32 %v539, %v550
        %v553 = vmul.f32 %v551, 1.442695
        %v554 = vpow.pop %v553
        %v555 = vmul.f32 %v552, 1.442695
        %v556 = vpow.pop %v555
        %558 = vset.pattern.permute.xlu0 0
        %559 = vperm.xlu0 %558, %v549
        %v560 = vpop.permute.xlu0 %559
        %563 = vset.pattern.permute.xlu0 0
        %564 = vperm.xlu0 %563, %v550
        %v565 = vpop.permute.xlu0 %564
        %v567 = vsub.f32 %v532, %v560
        %v568 = vsub.f32 %v535, %v565
        %v569 = vmul.f32 %v567, 1.442695
        %v570 = vpow.pop %v569
        %v571 = vmul.f32 %v568, 1.442695
        %v572 = vpow.pop %v571
        %v573 = vmul.f32 %v554, %v540
        %v574 = vmul.f32 %v556, %v541
        %v575 = vsel %vm542, %v570, 0.0
        %576 = vadd.xlane.f32.xlu0 %v575
        %v577 = vpop.xlane.xlu0 %576
        %v578 = vsel %vm542, %v572, 0.0
        %579 = vadd.xlane.f32.xlu0 %v578
        %v580 = vpop.xlane.xlu0 %579
        %v581 = vadd.f32 %v573, %v577
        %v582 = vadd.f32 %v574, %v580
        %vm583 = vcmask 7168
        %584 = vst.msk [vmem:[#allocation3] sm:$0xff] %vm583, %v581
        %585 = vst.msk [vmem:[#allocation3 + $0x8] sm:$0xff] %vm583, %v582
        %586 = vst.msk [vmem:[#allocation2] sm:$0xff] %vm583, %v549
        %587 = vst.msk [vmem:[#allocation2 + $0x8] sm:$0xff] %vm583, %v550
        %v588 = vpack.c.bf16 %v572, %v570
        %v591 = vunpack.c.l.b16 %v478
        %v592 = vunpack.c.l.b16 %v479
        %v593 = vpack.c.b16 %v592, %v591
        %v596 = vsel %vm542, %v588, 0
        %598 = vmatprep.subr.bf16.mxu0 0
        %599 = vmatpush1.bf16.msra.mxu0 %v593
        %600 = vmatprep.subr.bf16.mxu0 0
        %601 = vmatpush1.bf16.msra.mxu0 0
        %602 = vmatprep.subr.bf16.mxu0 0
        %603 = vmatpush1.bf16.msra.mxu0 0
        %604 = vmatprep.subr.bf16.mxu0 0
        %605 = vmatpush1.bf16.msra.mxu0 0
        %606 = vmatprep.subr.bf16.mxu0 0
        %607 = vmatpush1.bf16.msra.mxu0 0
        %608 = vmatprep.subr.bf16.mxu0 0
        %609 = vmatpush1.bf16.msra.mxu0 0
        %610 = vmatprep.subr.bf16.mxu0 0
        %611 = vmatpush1.bf16.msra.mxu0 0
        %612 = vmatprep.subr.bf16.mxu0 0
        %613 = vmatpush1.bf16.msra.mxu0 0
        %614 = vmatprep.subr.bf16.mxu0 0
        %615 = vmatpush1.bf16.msra.mxu0 0
        %616 = vmatprep.subr.bf16.mxu0 0
        %617 = vmatpush1.bf16.msra.mxu0 0
        %618 = vmatprep.subr.bf16.mxu0 0
        %619 = vmatpush1.bf16.msra.mxu0 0
        %620 = vmatprep.subr.bf16.mxu0 0
        %621 = vmatpush1.bf16.msra.mxu0 0
        %622 = vmatprep.subr.bf16.mxu0 0
        %623 = vmatpush1.bf16.msra.mxu0 0
        %624 = vmatprep.subr.bf16.mxu0 0
        %625 = vmatpush1.bf16.msra.mxu0 0
        %626 = vmatprep.subr.bf16.mxu0 0
        %627 = vmatpush1.bf16.msra.mxu0 0
        %628 = vmatprep.subr.bf16.mxu0 0
        %629 = vmatpush1.bf16.msra.mxu0 0
        %630 = vmatprep.mubr.bf16.mxu0 0
        %631 = vmatmul.mubr.bf16.gmra.mrb[0].mxu0 %v596
        %v632 = vpop.f32.mrb[0].mxu0
        %v633 = vadd.f32 0.0, %v632
        %v634 = vpop.f32.mrb[0].mxu0
        %v635 = vpop.f32.mrb[0].mxu0
        %v636 = vadd.f32 0.0, %v635
        %v637 = vpop.f32.mrb[0].mxu0
        %638 = vdwg.mxu0
        %v639 = vld [vmem:[#allocation4] sm:$0xff]
        %v640 = vld [vmem:[#allocation4 + $0x8] sm:$0xff]
        %642 = vset.pattern.permute.xlu0 0
        %643 = vperm.xlu0 %642, %v554
        %v644 = vpop.permute.xlu0 %643
        %647 = vset.pattern.permute.xlu0 0
        %648 = vperm.xlu0 %647, %v556
        %v649 = vpop.permute.xlu0 %648
        %v651 = vmul.f32 %v644, %v639
        %v652 = vmul.f32 %v649, %v640
        %v653 = vadd.f32 %v651, %v633
        %v654 = vadd.f32 %v652, %v636
        %655 = vst.msk [vmem:[#allocation4] sm:$0xff] %vm490, %v653
        %656 = vst.msk [vmem:[#allocation4 + $0x8] sm:$0xff] %vm490, %v654
        %657 = vrot.lane.b32.xlu0 %v484, 120
        %v658 = vpop.permute.xlu0 %657
        %659 = vrot.lane.b32.xlu0 %v489, 120
        %v660 = vpop.permute.xlu0 %659
        %v662 = vsel %vm490, %v658, 0
        %v665 = vsel %vm490, %v660, 0
        %667 = vmatprep.subr.bf16.mxu0 0
        %668 = vmatpush1.bf16.xpose.msra.mxu0 %v665
        %669 = vmatprep.subr.bf16.mxu0 0
        %670 = vmatpush1.bf16.xpose.msra.mxu0 0
        %671 = vmatprep.subr.bf16.mxu0 0
        %672 = vmatpush1.bf16.xpose.msra.mxu0 0
        %673 = vmatprep.subr.bf16.mxu0 0
        %674 = vmatpush1.bf16.xpose.msra.mxu0 0
        %675 = vmatprep.subr.bf16.mxu0 0
        %676 = vmatpush1.bf16.xpose.msra.mxu0 0
        %677 = vmatprep.subr.bf16.mxu0 0
        %678 = vmatpush1.bf16.xpose.msra.mxu0 0
        %679 = vmatprep.subr.bf16.mxu0 0
        %680 = vmatpush1.bf16.xpose.msra.mxu0 0
        %681 = vmatprep.subr.bf16.mxu0 0
        %682 = vmatpush1.bf16.xpose.msra.mxu0 0
        %683 = vmatprep.subr.bf16.mxu0 0
        %684 = vmatpush1.bf16.xpose.msra.mxu0 0
        %685 = vmatprep.subr.bf16.mxu0 0
        %686 = vmatpush1.bf16.xpose.msra.mxu0 0
        %687 = vmatprep.subr.bf16.mxu0 0
        %688 = vmatpush1.bf16.xpose.msra.mxu0 0
        %689 = vmatprep.subr.bf16.mxu0 0
        %690 = vmatpush1.bf16.xpose.msra.mxu0 0
        %691 = vmatprep.subr.bf16.mxu0 0
        %692 = vmatpush1.bf16.xpose.msra.mxu0 0
        %693 = vmatprep.subr.bf16.mxu0 0
        %694 = vmatpush1.bf16.xpose.msra.mxu0 0
        %695 = vmatprep.subr.bf16.mxu0 0
        %696 = vmatpush1.bf16.xpose.msra.mxu0 0
        %697 = vmatprep.subr.bf16.mxu0 0
        %698 = vmatpush1.bf16.xpose.msra.mxu0 0
        %699 = vmatprep.mubr.bf16.mxu0 0
        %700 = vmatmul.mubr.bf16.gmra.mrb[0].mxu0 %v662
        %v701 = vpop.f32.mrb[0].mxu0
        %v702 = vadd.f32 0.0, %v701
        %v703 = vpop.f32.mrb[0].mxu0
        %v704 = vpop.f32.mrb[0].mxu0
        %v705 = vadd.f32 0.0, %v704
        %v706 = vpop.f32.mrb[0].mxu0
        %707 = vdwg.mxu0
        %v708 = vld [vmem:[#allocation2] sm:$0xff]
        %v709 = vld [vmem:[#allocation2 + $0x8] sm:$0xff]
        %v710 = vld [vmem:[#allocation3] sm:$0xff]
        %v711 = vld [vmem:[#allocation3 + $0x8] sm:$0xff]
        %v712 = vsel %vm542, %v702, -inf
        %713 = vmax.xlane.f32.xlu0 %v712
        %v714 = vpop.xlane.xlu0 %713
        %v715 = vsel %vm542, %v705, -inf
        %716 = vmax.xlane.f32.xlu0 %v715
        %v717 = vpop.xlane.xlu0 %716
        %v718 = vmax.f32 %v708, %v714
        %v719 = vmax.f32 %v709, %v717
        %v720 = vsub.f32 %v708, %v718
        %v721 = vsub.f32 %v709, %v719
        %v722 = vmul.f32 %v720, 1.442695
        %v723 = vpow.pop %v722
        %v724 = vmul.f32 %v721, 1.442695
        %v725 = vpow.pop %v724
        %727 = vset.pattern.permute.xlu0 1
        %728 = vperm.xlu0 %727, %v718
        %v729 = vpop.permute.xlu0 %728
        %732 = vset.pattern.permute.xlu0 1
        %733 = vperm.xlu0 %732, %v719
        %v734 = vpop.permute.xlu0 %733
        %v736 = vsub.f32 %v702, %v729
        %v737 = vsub.f32 %v705, %v734
        %v738 = vmul.f32 %v736, 1.442695
        %v739 = vpow.pop %v738
        %v740 = vmul.f32 %v737, 1.442695
        %v741 = vpow.pop %v740
        %v742 = vmul.f32 %v723, %v710
        %v743 = vmul.f32 %v725, %v711
        %v744 = vsel %vm542, %v739, 0.0
        %745 = vadd.xlane.f32.xlu0 %v744
        %v746 = vpop.xlane.xlu0 %745
        %v747 = vsel %vm542, %v741, 0.0
        %748 = vadd.xlane.f32.xlu0 %v747
        %v749 = vpop.xlane.xlu0 %748
        %v750 = vadd.f32 %v742, %v746
        %v751 = vadd.f32 %v743, %v749
        %vm752 = vcmask 15368
        %753 = vst.msk [vmem:[#allocation3] sm:$0xff] %vm752, %v750
        %754 = vst.msk [vmem:[#allocation3 + $0x8] sm:$0xff] %vm752, %v751
        %755 = vst.msk [vmem:[#allocation2] sm:$0xff] %vm752, %v718
        %756 = vst.msk [vmem:[#allocation2 + $0x8] sm:$0xff] %vm752, %v719
        %v757 = vpack.c.bf16 %v741, %v739
        %758 = vrot.lane.b32.xlu0 %v593, 120
        %v759 = vpop.permute.xlu0 %758
        %v762 = vsel %vm542, %v757, 0
        %764 = vmatprep.subr.bf16.mxu0 0
        %765 = vmatpush1.bf16.msra.mxu0 %v759
        %766 = vmatprep.subr.bf16.mxu0 0
        %767 = vmatpush1.bf16.msra.mxu0 0
        %768 = vmatprep.subr.bf16.mxu0 0
        %769 = vmatpush1.bf16.msra.mxu0 0
        %770 = vmatprep.subr.bf16.mxu0 0
        %771 = vmatpush1.bf16.msra.mxu0 0
        %772 = vmatprep.subr.bf16.mxu0 0
        %773 = vmatpush1.bf16.msra.mxu0 0
        %774 = vmatprep.subr.bf16.mxu0 0
        %775 = vmatpush1.bf16.msra.mxu0 0
        %776 = vmatprep.subr.bf16.mxu0 0
        %777 = vmatpush1.bf16.msra.mxu0 0
        %778 = vmatprep.subr.bf16.mxu0 0
        %779 = vmatpush1.bf16.msra.mxu0 0
        %780 = vmatprep.subr.bf16.mxu0 0
        %781 = vmatpush1.bf16.msra.mxu0 0
        %782 = vmatprep.subr.bf16.mxu0 0
        %783 = vmatpush1.bf16.msra.mxu0 0
        %784 = vmatprep.subr.bf16.mxu0 0
        %785 = vmatpush1.bf16.msra.mxu0 0
        %786 = vmatprep.subr.bf16.mxu0 0
        %787 = vmatpush1.bf16.msra.mxu0 0
        %788 = vmatprep.subr.bf16.mxu0 0
        %789 = vmatpush1.bf16.msra.mxu0 0
        %790 = vmatprep.subr.bf16.mxu0 0
        %791 = vmatpush1.bf16.msra.mxu0 0
        %792 = vmatprep.subr.bf16.mxu0 0
        %793 = vmatpush1.bf16.msra.mxu0 0
        %794 = vmatprep.subr.bf16.mxu0 0
        %795 = vmatpush1.bf16.msra.mxu0 0
        %796 = vmatprep.mubr.bf16.mxu0 0
        %797 = vmatmul.mubr.bf16.gmra.mrb[0].mxu0 %v762
        %v798 = vpop.f32.mrb[0].mxu0
        %v799 = vadd.f32 0.0, %v798
        %v800 = vpop.f32.mrb[0].mxu0
        %v801 = vpop.f32.mrb[0].mxu0
        %v802 = vadd.f32 0.0, %v801
        %v803 = vpop.f32.mrb[0].mxu0
        %804 = vdwg.mxu0
        %v805 = vld [vmem:[#allocation4] sm:$0xff]
        %v806 = vld [vmem:[#allocation4 + $0x8] sm:$0xff]
        %808 = vset.pattern.permute.xlu0 1
        %809 = vperm.xlu0 %808, %v723
        %v810 = vpop.permute.xlu0 %809
        %813 = vset.pattern.permute.xlu0 1
        %814 = vperm.xlu0 %813, %v725
        %v815 = vpop.permute.xlu0 %814
        %v817 = vmul.f32 %v810, %v805
        %v818 = vmul.f32 %v815, %v806
        %821 = vrot.lane.b32.xlu0 %v799, 8
        %v822 = vpop.permute.xlu0 %821
        %823 = vrot.lane.b32.xlu0 %v802, 8
        %v824 = vpop.permute.xlu0 %823
        %v827 = vadd.f32 %v817, %v822
        %v828 = vadd.f32 %v818, %v824
        %vm829 = vcmask 130112
        %830 = vst.msk [vmem:[#allocation4] sm:$0xff] %vm829, %v827
        %831 = vst.msk [vmem:[#allocation4 + $0x8] sm:$0xff] %vm829, %v828
        %832 = vrot.lane.b32.xlu0 %v484, 112
        %v833 = vpop.permute.xlu0 %832
        %834 = vrot.lane.b32.xlu0 %v489, 112
        %v835 = vpop.permute.xlu0 %834
        %v837 = vsel %vm490, %v833, 0
        %v840 = vsel %vm490, %v835, 0
        %842 = vmatprep.subr.bf16.mxu0 0
        %843 = vmatpush1.bf16.xpose.msra.mxu0 %v840
        %844 = vmatprep.subr.bf16.mxu0 0
        %845 = vmatpush1.bf16.xpose.msra.mxu0 0
        %846 = vmatprep.subr.bf16.mxu0 0
        %847 = vmatpush1.bf16.xpose.msra.mxu0 0
        %848 = vmatprep.subr.bf16.mxu0 0
        %849 = vmatpush1.bf16.xpose.msra.mxu0 0
        %850 = vmatprep.subr.bf16.mxu0 0
        %851 = vmatpush1.bf16.xpose.msra.mxu0 0
        %852 = vmatprep.subr.bf16.mxu0 0
        %853 = vmatpush1.bf16.xpose.msra.mxu0 0
        %854 = vmatprep.subr.bf16.mxu0 0
        %855 = vmatpush1.bf16.xpose.msra.mxu0 0
        %856 = vmatprep.subr.bf16.mxu0 0
        %857 = vmatpush1.bf16.xpose.msra.mxu0 0
        %858 = vmatprep.subr.bf16.mxu0 0
        %859 = vmatpush1.bf16.xpose.msra.mxu0 0
        %860 = vmatprep.subr.bf16.mxu0 0
        %861 = vmatpush1.bf16.xpose.msra.mxu0 0
        %862 = vmatprep.subr.bf16.mxu0 0
        %863 = vmatpush1.bf16.xpose.msra.mxu0 0
        %864 = vmatprep.subr.bf16.mxu0 0
        %865 = vmatpush1.bf16.xpose.msra.mxu0 0
        %866 = vmatprep.subr.bf16.mxu0 0
        %867 = vmatpush1.bf16.xpose.msra.mxu0 0
        %868 = vmatprep.subr.bf16.mxu0 0
        %869 = vmatpush1.bf16.xpose.msra.mxu0 0
        %870 = vmatprep.subr.bf16.mxu0 0
        %871 = vmatpush1.bf16.xpose.msra.mxu0 0
        %872 = vmatprep.subr.bf16.mxu0 0
        %873 = vmatpush1.bf16.xpose.msra.mxu0 0
        %874 = vmatprep.mubr.bf16.mxu0 0
        %875 = vmatmul.mubr.bf16.gmra.mrb[0].mxu0 %v837
        %v876 = vpop.f32.mrb[0].mxu0
        %v877 = vadd.f32 0.0, %v876
        %v878 = vpop.f32.mrb[0].mxu0
        %v879 = vpop.f32.mrb[0].mxu0
        %v880 = vadd.f32 0.0, %v879
        %v881 = vpop.f32.mrb[0].mxu0
        %882 = vdwg.mxu0
        %v883 = vld [vmem:[#allocation2] sm:$0xff]
        %v884 = vld [vmem:[#allocation2 + $0x8] sm:$0xff]
        %v885 = vld [vmem:[#allocation3] sm:$0xff]
        %v886 = vld [vmem:[#allocation3 + $0x8] sm:$0xff]
        %v887 = vsel %vm542, %v877, -inf
        %888 = vmax.xlane.f32.xlu0 %v887
        %v889 = vpop.xlane.xlu0 %888
        %v890 = vsel %vm542, %v880, -inf
        %891 = vmax.xlane.f32.xlu0 %v890
        %v892 = vpop.xlane.xlu0 %891
        %v893 = vmax.f32 %v883, %v889
        %v894 = vmax.f32 %v884, %v892
        %v895 = vsub.f32 %v883, %v893
        %v896 = vsub.f32 %v884, %v894
        %v897 = vmul.f32 %v895, 1.442695
        %v898 = vpow.pop %v897
        %v899 = vmul.f32 %v896, 1.442695
        %v900 = vpow.pop %v899
        %902 = vset.pattern.permute.xlu0 2
        %903 = vperm.xlu0 %902, %v893
        %v904 = vpop.permute.xlu0 %903
        %907 = vset.pattern.permute.xlu0 2
        %908 = vperm.xlu0 %907, %v894
        %v909 = vpop.permute.xlu0 %908
        %v911 = vsub.f32 %v877, %v904
        %v912 = vsub.f32 %v880, %v909
        %v913 = vmul.f32 %v911, 1.442695
        %v914 = vpow.pop %v913
        %v915 = vmul.f32 %v912, 1.442695
        %v916 = vpow.pop %v915
        %v917 = vmul.f32 %v898, %v885
        %v918 = vmul.f32 %v900, %v886
        %v919 = vsel %vm542, %v914, 0.0
        %920 = vadd.xlane.f32.xlu0 %v919
        %v921 = vpop.xlane.xlu0 %920
        %v922 = vsel %vm542, %v916, 0.0
        %923 = vadd.xlane.f32.xlu0 %v922
        %v924 = vpop.xlane.xlu0 %923
        %v925 = vadd.f32 %v917, %v921
        %v926 = vadd.f32 %v918, %v924
        %vm927 = vcmask 23568
        %928 = vst.msk [vmem:[#allocation3] sm:$0xff] %vm927, %v925
        %929 = vst.msk [vmem:[#allocation3 + $0x8] sm:$0xff] %vm927, %v926
        %930 = vst.msk [vmem:[#allocation2] sm:$0xff] %vm927, %v893
        %931 = vst.msk [vmem:[#allocation2 + $0x8] sm:$0xff] %vm927, %v894
        %v932 = vpack.c.bf16 %v916, %v914
        %933 = vrot.lane.b32.xlu0 %v593, 112
        %v934 = vpop.permute.xlu0 %933
        %v937 = vsel %vm542, %v932, 0
        %939 = vmatprep.subr.bf16.mxu0 0
        %940 = vmatpush1.bf16.msra.mxu0 %v934
        %941 = vmatprep.subr.bf16.mxu0 0
        %942 = vmatpush1.bf16.msra.mxu0 0
        %943 = vmatprep.subr.bf16.mxu0 0
        %944 = vmatpush1.bf16.msra.mxu0 0
        %945 = vmatprep.subr.bf16.mxu0 0
        %946 = vmatpush1.bf16.msra.mxu0 0
        %947 = vmatprep.subr.bf16.mxu0 0
        %948 = vmatpush1.bf16.msra.mxu0 0
        %949 = vmatprep.subr.bf16.mxu0 0
        %950 = vmatpush1.bf16.msra.mxu0 0
        %951 = vmatprep.subr.bf16.mxu0 0
        %952 = vmatpush1.bf16.msra.mxu0 0
        %953 = vmatprep.subr.bf16.mxu0 0
        %954 = vmatpush1.bf16.msra.mxu0 0
        %955 = vmatprep.subr.bf16.mxu0 0
        %956 = vmatpush1.bf16.msra.mxu0 0
        %957 = vmatprep.subr.bf16.mxu0 0
        %958 = vmatpush1.bf16.msra.mxu0 0
        %959 = vmatprep.subr.bf16.mxu0 0
        %960 = vmatpush1.bf16.msra.mxu0 0
        %961 = vmatprep.subr.bf16.mxu0 0
        %962 = vmatpush1.bf16.msra.mxu0 0
        %963 = vmatprep.subr.bf16.mxu0 0
        %964 = vmatpush1.bf16.msra.mxu0 0
        %965 = vmatprep.subr.bf16.mxu0 0
        %966 = vmatpush1.bf16.msra.mxu0 0
        %967 = vmatprep.subr.bf16.mxu0 0
        %968 = vmatpush1.bf16.msra.mxu0 0
        %969 = vmatprep.subr.bf16.mxu0 0
        %970 = vmatpush1.bf16.msra.mxu0 0
        %971 = vmatprep.mubr.bf16.mxu0 0
        %972 = vmatmul.mubr.bf16.gmra.mrb[0].mxu0 %v937
        %v973 = vpop.f32.mrb[0].mxu0
        %v974 = vadd.f32 0.0, %v973
        %v975 = vpop.f32.mrb[0].mxu0
        %v976 = vpop.f32.mrb[0].mxu0
        %v977 = vadd.f32 0.0, %v976
        %v978 = vpop.f32.mrb[0].mxu0
        %979 = vdwg.mxu0
        %v980 = vld [vmem:[#allocation4] sm:$0xff]
        %v981 = vld [vmem:[#allocation4 + $0x8] sm:$0xff]
        %983 = vset.pattern.permute.xlu0 2
        %984 = vperm.xlu0 %983, %v898
        %v985 = vpop.permute.xlu0 %984
        %988 = vset.pattern.permute.xlu0 2
        %989 = vperm.xlu0 %988, %v900
        %v990 = vpop.permute.xlu0 %989
        %v992 = vmul.f32 %v985, %v980
        %v993 = vmul.f32 %v990, %v981
        %996 = vrot.lane.b32.xlu0 %v974, 16
        %v997 = vpop.permute.xlu0 %996
        %998 = vrot.lane.b32.xlu0 %v977, 16
        %v999 = vpop.permute.xlu0 %998
        %v1002 = vadd.f32 %v992, %v997
        %v1003 = vadd.f32 %v993, %v999
        %vm1004 = vcmask 195712
        %1005 = vst.msk [vmem:[#allocation4] sm:$0xff] %vm1004, %v1002
        %1006 = vst.msk [vmem:[#allocation4 + $0x8] sm:$0xff] %vm1004, %v1003
        %1007 = vrot.lane.b32.xlu0 %v484, 104
        %v1008 = vpop.permute.xlu0 %1007
        %1009 = vrot.lane.b32.xlu0 %v489, 104
        %v1010 = vpop.permute.xlu0 %1009
        %v1012 = vsel %vm490, %v1008, 0
        %v1015 = vsel %vm490, %v1010, 0
        %1017 = vmatprep.subr.bf16.mxu0 0
        %1018 = vmatpush1.bf16.xpose.msra.mxu0 %v1015
        %1019 = vmatprep.subr.bf16.mxu0 0
        %1020 = vmatpush1.bf16.xpose.msra.mxu0 0
        %1021 = vmatprep.subr.bf16.mxu0 0
        %1022 = vmatpush1.bf16.xpose.msra.mxu0 0
        %1023 = vmatprep.subr.bf16.mxu0 0
        %1024 = vmatpush1.bf16.xpose.msra.mxu0 0
        %1025 = vmatprep.subr.bf16.mxu0 0
        %1026 = vmatpush1.bf16.xpose.msra.mxu0 0
        %1027 = vmatprep.subr.bf16.mxu0 0
        %1028 = vmatpush1.bf16.xpose.msra.mxu0 0
        %1029 = vmatprep.subr.bf16.mxu0 0
        %1030 = vmatpush1.bf16.xpose.msra.mxu0 0
        %1031 = vmatprep.subr.bf16.mxu0 0
        %1032 = vmatpush1.bf16.xpose.msra.mxu0 0
        %1033 = vmatprep.subr.bf16.mxu0 0
        %1034 = vmatpush1.bf16.xpose.msra.mxu0 0
        %1035 = vmatprep.subr.bf16.mxu0 0
        %1036 = vmatpush1.bf16.xpose.msra.mxu0 0
        %1037 = vmatprep.subr.bf16.mxu0 0
        %1038 = vmatpush1.bf16.xpose.msra.mxu0 0
        %1039 = vmatprep.subr.bf16.mxu0 0
        %1040 = vmatpush1.bf16.xpose.msra.mxu0 0
        %1041 = vmatprep.subr.bf16.mxu0 0
        %1042 = vmatpush1.bf16.xpose.msra.mxu0 0
        %1043 = vmatprep.subr.bf16.mxu0 0
        %1044 = vmatpush1.bf16.xpose.msra.mxu0 0
        %1045 = vmatprep.subr.bf16.mxu0 0
        %1046 = vmatpush1.bf16.xpose.msra.mxu0 0
        %1047 = vmatprep.subr.bf16.mxu0 0
        %1048 = vmatpush1.bf16.xpose.msra.mxu0 0
        %1049 = vmatprep.mubr.bf16.mxu0 0
        %1050 = vmatmul.mubr.bf16.gmra.mrb[0].mxu0 %v1012
        %v1051 = vpop.f32.mrb[0].mxu0
        %v1052 = vadd.f32 0.0, %v1051
        %v1053 = vpop.f32.mrb[0].mxu0
        %v1054 = vpop.f32.mrb[0].mxu0
        %v1055 = vadd.f32 0.0, %v1054
        %v1056 = vpop.f32.mrb[0].mxu0
        %1057 = vdwg.mxu0
        %v1058 = vld [vmem:[#allocation2] sm:$0xff]
        %v1059 = vld [vmem:[#allocation2 + $0x8] sm:$0xff]
        %v1060 = vld [vmem:[#allocation3] sm:$0xff]
        %v1061 = vld [vmem:[#allocation3 + $0x8] sm:$0xff]
        %v1062 = vsel %vm542, %v1052, -inf
        %1063 = vmax.xlane.f32.xlu0 %v1062
        %v1064 = vpop.xlane.xlu0 %1063
        %v1065 = vsel %vm542, %v1055, -inf
        %1066 = vmax.xlane.f32.xlu0 %v1065
        %v1067 = vpop.xlane.xlu0 %1066
        %v1068 = vmax.f32 %v1058, %v1064
        %v1069 = vmax.f32 %v1059, %v1067
        %v1070 = vsub.f32 %v1058, %v1068
        %v1071 = vsub.f32 %v1059, %v1069
        %v1072 = vmul.f32 %v1070, 1.442695
        %v1073 = vpow.pop %v1072
        %v1074 = vmul.f32 %v1071, 1.442695
        %v1075 = vpow.pop %v1074
        %1077 = vset.pattern.permute.xlu0 3
        %1078 = vperm.xlu0 %1077, %v1068
        %v1079 = vpop.permute.xlu0 %1078
        %1082 = vset.pattern.permute.xlu0 3
        %1083 = vperm.xlu0 %1082, %v1069
        %v1084 = vpop.permute.xlu0 %1083
        %v1086 = vsub.f32 %v1052, %v1079
        %v1087 = vsub.f32 %v1055, %v1084
        %v1088 = vmul.f32 %v1086, 1.442695
        %v1089 = vpow.pop %v1088
        %v1090 = vmul.f32 %v1087, 1.442695
        %v1091 = vpow.pop %v1090
        %v1092 = vmul.f32 %v1073, %v1060
        %v1093 = vmul.f32 %v1075, %v1061
        %v1094 = vsel %vm542, %v1089, 0.0
        %1095 = vadd.xlane.f32.xlu0 %v1094
        %v1096 = vpop.xlane.xlu0 %1095
        %v1097 = vsel %vm542, %v1091, 0.0
        %1098 = vadd.xlane.f32.xlu0 %v1097
        %v1099 = vpop.xlane.xlu0 %1098
        %v1100 = vadd.f32 %v1092, %v1096
        %v1101 = vadd.f32 %v1093, %v1099
        %vm1102 = vcmask 31768
        %1103 = vst.msk [vmem:[#allocation3] sm:$0xff] %vm1102, %v1100
        %1104 = vst.msk [vmem:[#allocation3 + $0x8] sm:$0xff] %vm1102, %v1101
        %1105 = vst.msk [vmem:[#allocation2] sm:$0xff] %vm1102, %v1068
        %1106 = vst.msk [vmem:[#allocation2 + $0x8] sm:$0xff] %vm1102, %v1069
        %v1107 = vpack.c.bf16 %v1091, %v1089
        %1108 = vrot.lane.b32.xlu0 %v593, 104
        %v1109 = vpop.permute.xlu0 %1108
        %v1112 = vsel %vm542, %v1107, 0
        %1114 = vmatprep.subr.bf16.mxu0 0
        %1115 = vmatpush1.bf16.msra.mxu0 %v1109
        %1116 = vmatprep.subr.bf16.mxu0 0
        %1117 = vmatpush1.bf16.msra.mxu0 0
        %1118 = vmatprep.subr.bf16.mxu0 0
        %1119 = vmatpush1.bf16.msra.mxu0 0
        %1120 = vmatprep.subr.bf16.mxu0 0
        %1121 = vmatpush1.bf16.msra.mxu0 0
        %1122 = vmatprep.subr.bf16.mxu0 0
        %1123 = vmatpush1.bf16.msra.mxu0 0
        %1124 = vmatprep.subr.bf16.mxu0 0
        %1125 = vmatpush1.bf16.msra.mxu0 0
        %1126 = vmatprep.subr.bf16.mxu0 0
        %1127 = vmatpush1.bf16.msra.mxu0 0
        %1128 = vmatprep.subr.bf16.mxu0 0
        %1129 = vmatpush1.bf16.msra.mxu0 0
        %1130 = vmatprep.subr.bf16.mxu0 0
        %1131 = vmatpush1.bf16.msra.mxu0 0
        %1132 = vmatprep.subr.bf16.mxu0 0
        %1133 = vmatpush1.bf16.msra.mxu0 0
        %1134 = vmatprep.subr.bf16.mxu0 0
        %1135 = vmatpush1.bf16.msra.mxu0 0
        %1136 = vmatprep.subr.bf16.mxu0 0
        %1137 = vmatpush1.bf16.msra.mxu0 0
        %1138 = vmatprep.subr.bf16.mxu0 0
        %1139 = vmatpush1.bf16.msra.mxu0 0
        %1140 = vmatprep.subr.bf16.mxu0 0
        %1141 = vmatpush1.bf16.msra.mxu0 0
        %1142 = vmatprep.subr.bf16.mxu0 0
        %1143 = vmatpush1.bf16.msra.mxu0 0
        %1144 = vmatprep.subr.bf16.mxu0 0
        %1145 = vmatpush1.bf16.msra.mxu0 0
        %1146 = vmatprep.mubr.bf16.mxu0 0
        %1147 = vmatmul.mubr.bf16.gmra.mrb[0].mxu0 %v1112
        %v1148 = vpop.f32.mrb[0].mxu0
        %v1149 = vadd.f32 0.0, %v1148
        %v1150 = vpop.f32.mrb[0].mxu0
        %v1151 = vpop.f32.mrb[0].mxu0
        %v1152 = vadd.f32 0.0, %v1151
        %v1153 = vpop.f32.mrb[0].mxu0
        %1154 = vdwg.mxu0
        %v1155 = vld [vmem:[#allocation4] sm:$0xff]
        %v1156 = vld [vmem:[#allocation4 + $0x8] sm:$0xff]
        %1158 = vset.pattern.permute.xlu0 3
        %1159 = vperm.xlu0 %1158, %v1073
        %v1160 = vpop.permute.xlu0 %1159
        %1163 = vset.pattern.permute.xlu0 3
        %1164 = vperm.xlu0 %1163, %v1075
        %v1165 = vpop.permute.xlu0 %1164
        %v1167 = vmul.f32 %v1160, %v1155
        %v1168 = vmul.f32 %v1165, %v1156
        %1171 = vrot.lane.b32.xlu0 %v1149, 24
        %v1172 = vpop.permute.xlu0 %1171
        %1173 = vrot.lane.b32.xlu0 %v1152, 24
        %v1174 = vpop.permute.xlu0 %1173
        %v1177 = vadd.f32 %v1167, %v1172
        %v1178 = vadd.f32 %v1168, %v1174
        %vm1179 = vcmask 261312
        %1180 = vst.msk [vmem:[#allocation4] sm:$0xff] %vm1179, %v1177
        %1181 = vst.msk [vmem:[#allocation4 + $0x8] sm:$0xff] %vm1179, %v1178
        %p1182 = scmp.eq.s32.totalorder %s37, 1
        // Predicated region
        $region69: #{tpu_custom_call.1} parent=47 // pred_check
          %p1183 = pneg %p1182
        $region70: #{tpu_custom_call.1} parent=47 // pred_check_branch
          %1185 = sbr.rel (%p1183) target = $region72
        $region71: #{tpu_custom_call.1} parent=47 // pred_region
          %v1186 = vld [vmem:[%s6] sm:$0x1]
          %v1187 = vld [vmem:[%s406] sm:$0xf]
          %v1188 = vld [vmem:[%s460] sm:$0x1]
          %v1189 = vld [vmem:[%s379] sm:$0xf]
          %v1190 = vld [vmem:[%s379 + $0x4] sm:$0xf]
          %v1191 = vunpack.c.l.bf16 %v1189
          %v1192 = vunpack.c.l.bf16 %v1190
          %vm1193 = vcmp.gt.f32.partialorder %v1191, 0.0
          %vm1194 = vcmp.gt.f32.partialorder %v1192, 0.0
          %v1195 = vadd.f32 %v1191, 1.0
          %v1196 = vadd.f32 %v1192, 1.0
          %v1197 = vmul.f32 %v1191, 1.442695
          %v1198 = vpow.pop %v1197
          %v1199 = vmul.f32 %v1192, 1.442695
          %v1200 = vpow.pop %v1199
          %v1201 = vsel %vm1193, %v1195, %v1198
          %v1202 = vsel %vm1194, %v1196, %v1200
          %v1203 = vpack.c.bf16 %v1202, %v1201
          %v1205 = vsel %vm490, %v1203, 0
          %vm1207 = vcmask 1043456
          %v1209 = vsel %vm1207, %v1187, 0
          %1211 = vmatprep.subr.bf16.mxu0 0
          %1212 = vmatpush1.bf16.msra.mxu0 %v1209
          %1213 = vmatprep.subr.bf16.mxu0 0
          %1214 = vmatpush1.bf16.msra.mxu0 0
          %1215 = vmatprep.subr.bf16.mxu0 0
          %1216 = vmatpush1.bf16.msra.mxu0 0
          %1217 = vmatprep.subr.bf16.mxu0 0
          %1218 = vmatpush1.bf16.msra.mxu0 0
          %1219 = vmatprep.subr.bf16.mxu0 0
          %1220 = vmatpush1.bf16.msra.mxu0 0
          %1221 = vmatprep.subr.bf16.mxu0 0
          %1222 = vmatpush1.bf16.msra.mxu0 0
          %1223 = vmatprep.subr.bf16.mxu0 0
          %1224 = vmatpush1.bf16.msra.mxu0 0
          %1225 = vmatprep.subr.bf16.mxu0 0
          %1226 = vmatpush1.bf16.msra.mxu0 0
          %1227 = vmatprep.subr.bf16.mxu0 0
          %1228 = vmatpush1.bf16.msra.mxu0 0
          %1229 = vmatprep.subr.bf16.mxu0 0
          %1230 = vmatpush1.bf16.msra.mxu0 0
          %1231 = vmatprep.subr.bf16.mxu0 0
          %1232 = vmatpush1.bf16.msra.mxu0 0
          %1233 = vmatprep.subr.bf16.mxu0 0
          %1234 = vmatpush1.bf16.msra.mxu0 0
          %1235 = vmatprep.subr.bf16.mxu0 0
          %1236 = vmatpush1.bf16.msra.mxu0 0
          %1237 = vmatprep.subr.bf16.mxu0 0
          %1238 = vmatpush1.bf16.msra.mxu0 0
          %1239 = vmatprep.subr.bf16.mxu0 0
          %1240 = vmatpush1.bf16.msra.mxu0 0
          %1241 = vmatprep.subr.bf16.mxu0 0
          %1242 = vmatpush1.bf16.msra.mxu0 0
          %1243 = vmatprep.mubr.bf16.mxu0 0
          %1244 = vmatmul.mubr.bf16.gmra.mrb[0].mxu0 %v1205
          %v1245 = vpop.f32.mrb[0].mxu0
          %v1246 = vadd.f32 0.0, %v1245
          %v1247 = vpop.f32.mrb[0].mxu0
          %v1248 = vpop.f32.mrb[0].mxu0
          %v1249 = vadd.f32 0.0, %v1248
          %v1250 = vpop.f32.mrb[0].mxu0
          %1251 = vdwg.mxu0
          %v1253 = vlaneseq
          %v1254 = vshrl.u32 %v1253, 7
          %v1255 = vsub.s32 0, %v1254
          %v1256 = vrot.slane %v1188, %v1255
          %v1258 = vmul.f32 %v1201, %v1256
          %v1259 = vmul.f32 %v1202, %v1256
          %v1260 = vsel %vm490, %v1258, 0.0
          %1261 = vadd.xlane.f32.xlu0 %v1260
          %v1262 = vpop.xlane.xlu0 %1261
          %v1263 = vsel %vm490, %v1259, 0.0
          %1264 = vadd.xlane.f32.xlu0 %v1263
          %v1265 = vpop.xlane.xlu0 %1264
          %v1266 = vld [vmem:[#allocation4] sm:$0xff]
          %v1267 = vld [vmem:[#allocation4 + $0x8] sm:$0xff]
          %v1268 = vld [vmem:[#allocation3] sm:$0xff]
          %v1269 = vld [vmem:[#allocation3 + $0x8] sm:$0xff]
          %1271 = vset.pattern.permute.xlu0 0
          %1272 = vperm.xlu0 %1271, %v1268
          %v1273 = vpop.permute.xlu0 %1272
          %1276 = vset.pattern.permute.xlu0 0
          %1277 = vperm.xlu0 %1276, %v1269
          %v1278 = vpop.permute.xlu0 %1277
          %v1280 = vrcp.pop %v1273
          %v1281 = vmul.f32 %v1266, %v1280
          %v1282 = vrcp.pop %v1278
          %v1283 = vmul.f32 %v1267, %v1282
          %v1284 = vrcp.pop %v1262
          %v1285 = vmul.f32 %v1246, %v1284
          %v1286 = vrcp.pop %v1265
          %v1287 = vmul.f32 %v1249, %v1286
          %v1289 = vlaneseq
          %v1290 = vshrl.u32 %v1289, 7
          %v1291 = vsub.s32 0, %v1290
          %v1292 = vrot.slane %v1186, %v1291
          %v1294 = vmul.f32 %v1292, %v1285
          %v1295 = vmul.f32 %v1292, %v1287
          %v1296 = vsub.f32 1.0, %v1186
          %v1298 = vlaneseq
          %v1299 = vshrl.u32 %v1298, 7
          %v1300 = vsub.s32 0, %v1299
          %v1301 = vrot.slane %v1296, %v1300
          %v1303 = vmul.f32 %v1301, %v1281
          %v1304 = vmul.f32 %v1301, %v1283
          %v1305 = vadd.f32 %v1294, %v1303
          %v1306 = vadd.f32 %v1295, %v1304
          %1307 = vst.msk [vmem:[#allocation4] sm:$0xff] %vm490, %v1305
          %1308 = vst.msk [vmem:[#allocation4 + $0x8] sm:$0xff] %vm490, %v1306
          %1310 = vrot.lane.b32.xlu0 %v1203, 120
          %v1311 = vpop.permute.xlu0 %1310
          %v1313 = vunpack.c.l.b16 %v1187
          %v1314 = vpack.c.b16 %v1313, %v1313
          %1315 = vrot.lane.b32.xlu0 %v1314, 120
          %v1316 = vpop.permute.xlu0 %1315
          %v1318 = vsel %vm490, %v1311, 0
          %v1321 = vsel %vm1207, %v1316, 0
          %1323 = vmatprep.subr.bf16.mxu0 0
          %1324 = vmatpush1.bf16.msra.mxu0 %v1321
          %1325 = vmatprep.subr.bf16.mxu0 0
          %1326 = vmatpush1.bf16.msra.mxu0 0
          %1327 = vmatprep.subr.bf16.mxu0 0
          %1328 = vmatpush1.bf16.msra.mxu0 0
          %1329 = vmatprep.subr.bf16.mxu0 0
          %1330 = vmatpush1.bf16.msra.mxu0 0
          %1331 = vmatprep.subr.bf16.mxu0 0
          %1332 = vmatpush1.bf16.msra.mxu0 0
          %1333 = vmatprep.subr.bf16.mxu0 0
          %1334 = vmatpush1.bf16.msra.mxu0 0
          %1335 = vmatprep.subr.bf16.mxu0 0
          %1336 = vmatpush1.bf16.msra.mxu0 0
          %1337 = vmatprep.subr.bf16.mxu0 0
          %1338 = vmatpush1.bf16.msra.mxu0 0
          %1339 = vmatprep.subr.bf16.mxu0 0
          %1340 = vmatpush1.bf16.msra.mxu0 0
          %1341 = vmatprep.subr.bf16.mxu0 0
          %1342 = vmatpush1.bf16.msra.mxu0 0
          %1343 = vmatprep.subr.bf16.mxu0 0
          %1344 = vmatpush1.bf16.msra.mxu0 0
          %1345 = vmatprep.subr.bf16.mxu0 0
          %1346 = vmatpush1.bf16.msra.mxu0 0
          %1347 = vmatprep.subr.bf16.mxu0 0
          %1348 = vmatpush1.bf16.msra.mxu0 0
          %1349 = vmatprep.subr.bf16.mxu0 0
          %1350 = vmatpush1.bf16.msra.mxu0 0
          %1351 = vmatprep.subr.bf16.mxu0 0
          %1352 = vmatpush1.bf16.msra.mxu0 0
          %1353 = vmatprep.subr.bf16.mxu0 0
          %1354 = vmatpush1.bf16.msra.mxu0 0
          %1355 = vmatprep.mubr.bf16.mxu0 0
          %1356 = vmatmul.mubr.bf16.gmra.mrb[0].mxu0 %v1318
          %v1357 = vpop.f32.mrb[0].mxu0
          %v1358 = vadd.f32 0.0, %v1357
          %v1359 = vpop.f32.mrb[0].mxu0
          %v1360 = vpop.f32.mrb[0].mxu0
          %v1361 = vadd.f32 0.0, %v1360
          %v1362 = vpop.f32.mrb[0].mxu0
          %1363 = vdwg.mxu0
          %1366 = vrot.lane.b32.xlu0 %v1258, 120
          %v1367 = vpop.permute.xlu0 %1366
          %1368 = vrot.lane.b32.xlu0 %v1259, 120
          %v1369 = vpop.permute.xlu0 %1368
          %v1372 = vsel %vm490, %v1367, 0.0
          %1373 = vadd.xlane.f32.xlu0 %v1372
          %v1374 = vpop.xlane.xlu0 %1373
          %v1375 = vsel %vm490, %v1369, 0.0
          %1376 = vadd.xlane.f32.xlu0 %v1375
          %v1377 = vpop.xlane.xlu0 %1376
          %v1378 = vld [vmem:[#allocation4] sm:$0xff]
          %v1379 = vld [vmem:[#allocation4 + $0x8] sm:$0xff]
          %v1380 = vld [vmem:[#allocation3] sm:$0xff]
          %v1381 = vld [vmem:[#allocation3 + $0x8] sm:$0xff]
          %1383 = vset.pattern.permute.xlu0 1
          %1384 = vperm.xlu0 %1383, %v1380
          %v1385 = vpop.permute.xlu0 %1384
          %1388 = vset.pattern.permute.xlu0 1
          %1389 = vperm.xlu0 %1388, %v1381
          %v1390 = vpop.permute.xlu0 %1389
          %v1392 = vrcp.pop %v1385
          %v1393 = vmul.f32 %v1378, %v1392
          %v1394 = vrcp.pop %v1390
          %v1395 = vmul.f32 %v1379, %v1394
          %v1396 = vrcp.pop %v1374
          %v1397 = vmul.f32 %v1358, %v1396
          %v1398 = vrcp.pop %v1377
          %v1399 = vmul.f32 %v1361, %v1398
          %1402 = vrot.lane.b32.xlu0 %v1397, 8
          %v1403 = vpop.permute.xlu0 %1402
          %1404 = vrot.lane.b32.xlu0 %v1399, 8
          %v1405 = vpop.permute.xlu0 %1404
          %v1408 = vmul.f32 %v1292, %v1403
          %v1409 = vmul.f32 %v1292, %v1405
          %v1410 = vmul.f32 %v1301, %v1393
          %v1411 = vmul.f32 %v1301, %v1395
          %v1412 = vadd.f32 %v1408, %v1410
          %v1413 = vadd.f32 %v1409, %v1411
          %1414 = vst.msk [vmem:[#allocation4] sm:$0xff] %vm829, %v1412
          %1415 = vst.msk [vmem:[#allocation4 + $0x8] sm:$0xff] %vm829, %v1413
          %1416 = vrot.lane.b32.xlu0 %v1203, 112
          %v1417 = vpop.permute.xlu0 %1416
          %1418 = vrot.lane.b32.xlu0 %v1314, 112
          %v1419 = vpop.permute.xlu0 %1418
          %v1421 = vsel %vm490, %v1417, 0
          %v1424 = vsel %vm1207, %v1419, 0
          %1426 = vmatprep.subr.bf16.mxu0 0
          %1427 = vmatpush1.bf16.msra.mxu0 %v1424
          %1428 = vmatprep.subr.bf16.mxu0 0
          %1429 = vmatpush1.bf16.msra.mxu0 0
          %1430 = vmatprep.subr.bf16.mxu0 0
          %1431 = vmatpush1.bf16.msra.mxu0 0
          %1432 = vmatprep.subr.bf16.mxu0 0
          %1433 = vmatpush1.bf16.msra.mxu0 0
          %1434 = vmatprep.subr.bf16.mxu0 0
          %1435 = vmatpush1.bf16.msra.mxu0 0
          %1436 = vmatprep.subr.bf16.mxu0 0
          %1437 = vmatpush1.bf16.msra.mxu0 0
          %1438 = vmatprep.subr.bf16.mxu0 0
          %1439 = vmatpush1.bf16.msra.mxu0 0
          %1440 = vmatprep.subr.bf16.mxu0 0
          %1441 = vmatpush1.bf16.msra.mxu0 0
          %1442 = vmatprep.subr.bf16.mxu0 0
          %1443 = vmatpush1.bf16.msra.mxu0 0
          %1444 = vmatprep.subr.bf16.mxu0 0
          %1445 = vmatpush1.bf16.msra.mxu0 0
          %1446 = vmatprep.subr.bf16.mxu0 0
          %1447 = vmatpush1.bf16.msra.mxu0 0
          %1448 = vmatprep.subr.bf16.mxu0 0
          %1449 = vmatpush1.bf16.msra.mxu0 0
          %1450 = vmatprep.subr.bf16.mxu0 0
          %1451 = vmatpush1.bf16.msra.mxu0 0
          %1452 = vmatprep.subr.bf16.mxu0 0
          %1453 = vmatpush1.bf16.msra.mxu0 0
          %1454 = vmatprep.subr.bf16.mxu0 0
          %1455 = vmatpush1.bf16.msra.mxu0 0
          %1456 = vmatprep.subr.bf16.mxu0 0
          %1457 = vmatpush1.bf16.msra.mxu0 0
          %1458 = vmatprep.mubr.bf16.mxu0 0
          %1459 = vmatmul.mubr.bf16.gmra.mrb[0].mxu0 %v1421
          %v1460 = vpop.f32.mrb[0].mxu0
          %v1461 = vadd.f32 0.0, %v1460
          %v1462 = vpop.f32.mrb[0].mxu0
          %v1463 = vpop.f32.mrb[0].mxu0
          %v1464 = vadd.f32 0.0, %v1463
          %v1465 = vpop.f32.mrb[0].mxu0
          %1466 = vdwg.mxu0
          %1467 = vrot.lane.b32.xlu0 %v1258, 112
          %v1468 = vpop.permute.xlu0 %1467
          %1469 = vrot.lane.b32.xlu0 %v1259, 112
          %v1470 = vpop.permute.xlu0 %1469
          %v1473 = vsel %vm490, %v1468, 0.0
          %1474 = vadd.xlane.f32.xlu0 %v1473
          %v1475 = vpop.xlane.xlu0 %1474
          %v1476 = vsel %vm490, %v1470, 0.0
          %1477 = vadd.xlane.f32.xlu0 %v1476
          %v1478 = vpop.xlane.xlu0 %1477
          %v1479 = vld [vmem:[#allocation4] sm:$0xff]
          %v1480 = vld [vmem:[#allocation4 + $0x8] sm:$0xff]
          %v1481 = vld [vmem:[#allocation3] sm:$0xff]
          %v1482 = vld [vmem:[#allocation3 + $0x8] sm:$0xff]
          %1484 = vset.pattern.permute.xlu0 2
          %1485 = vperm.xlu0 %1484, %v1481
          %v1486 = vpop.permute.xlu0 %1485
          %1489 = vset.pattern.permute.xlu0 2
          %1490 = vperm.xlu0 %1489, %v1482
          %v1491 = vpop.permute.xlu0 %1490
          %v1493 = vrcp.pop %v1486
          %v1494 = vmul.f32 %v1479, %v1493
          %v1495 = vrcp.pop %v1491
          %v1496 = vmul.f32 %v1480, %v1495
          %v1497 = vrcp.pop %v1475
          %v1498 = vmul.f32 %v1461, %v1497
          %v1499 = vrcp.pop %v1478
          %v1500 = vmul.f32 %v1464, %v1499
          %1503 = vrot.lane.b32.xlu0 %v1498, 16
          %v1504 = vpop.permute.xlu0 %1503
          %1505 = vrot.lane.b32.xlu0 %v1500, 16
          %v1506 = vpop.permute.xlu0 %1505
          %v1509 = vmul.f32 %v1292, %v1504
          %v1510 = vmul.f32 %v1292, %v1506
          %v1511 = vmul.f32 %v1301, %v1494
          %v1512 = vmul.f32 %v1301, %v1496
          %v1513 = vadd.f32 %v1509, %v1511
          %v1514 = vadd.f32 %v1510, %v1512
          %1515 = vst.msk [vmem:[#allocation4] sm:$0xff] %vm1004, %v1513
          %1516 = vst.msk [vmem:[#allocation4 + $0x8] sm:$0xff] %vm1004, %v1514
          %1517 = vrot.lane.b32.xlu0 %v1203, 104
          %v1518 = vpop.permute.xlu0 %1517
          %1519 = vrot.lane.b32.xlu0 %v1314, 104
          %v1520 = vpop.permute.xlu0 %1519
          %v1522 = vsel %vm490, %v1518, 0
          %v1525 = vsel %vm1207, %v1520, 0
          %1527 = vmatprep.subr.bf16.mxu0 0
          %1528 = vmatpush1.bf16.msra.mxu0 %v1525
          %1529 = vmatprep.subr.bf16.mxu0 0
          %1530 = vmatpush1.bf16.msra.mxu0 0
          %1531 = vmatprep.subr.bf16.mxu0 0
          %1532 = vmatpush1.bf16.msra.mxu0 0
          %1533 = vmatprep.subr.bf16.mxu0 0
          %1534 = vmatpush1.bf16.msra.mxu0 0
          %1535 = vmatprep.subr.bf16.mxu0 0
          %1536 = vmatpush1.bf16.msra.mxu0 0
          %1537 = vmatprep.subr.bf16.mxu0 0
          %1538 = vmatpush1.bf16.msra.mxu0 0
          %1539 = vmatprep.subr.bf16.mxu0 0
          %1540 = vmatpush1.bf16.msra.mxu0 0
          %1541 = vmatprep.subr.bf16.mxu0 0
          %1542 = vmatpush1.bf16.msra.mxu0 0
          %1543 = vmatprep.subr.bf16.mxu0 0
          %1544 = vmatpush1.bf16.msra.mxu0 0
          %1545 = vmatprep.subr.bf16.mxu0 0
          %1546 = vmatpush1.bf16.msra.mxu0 0
          %1547 = vmatprep.subr.bf16.mxu0 0
          %1548 = vmatpush1.bf16.msra.mxu0 0
          %1549 = vmatprep.subr.bf16.mxu0 0
          %1550 = vmatpush1.bf16.msra.mxu0 0
          %1551 = vmatprep.subr.bf16.mxu0 0
          %1552 = vmatpush1.bf16.msra.mxu0 0
          %1553 = vmatprep.subr.bf16.mxu0 0
          %1554 = vmatpush1.bf16.msra.mxu0 0
          %1555 = vmatprep.subr.bf16.mxu0 0
          %1556 = vmatpush1.bf16.msra.mxu0 0
          %1557 = vmatprep.subr.bf16.mxu0 0
          %1558 = vmatpush1.bf16.msra.mxu0 0
          %1559 = vmatprep.mubr.bf16.mxu0 0
          %1560 = vmatmul.mubr.bf16.gmra.mrb[0].mxu0 %v1522
          %v1561 = vpop.f32.mrb[0].mxu0
          %v1562 = vadd.f32 0.0, %v1561
          %v1563 = vpop.f32.mrb[0].mxu0
          %v1564 = vpop.f32.mrb[0].mxu0
          %v1565 = vadd.f32 0.0, %v1564
          %v1566 = vpop.f32.mrb[0].mxu0
          %1567 = vdwg.mxu0
          %1568 = vrot.lane.b32.xlu0 %v1258, 104
          %v1569 = vpop.permute.xlu0 %1568
          %1570 = vrot.lane.b32.xlu0 %v1259, 104
          %v1571 = vpop.permute.xlu0 %1570
          %v1574 = vsel %vm490, %v1569, 0.0
          %1575 = vadd.xlane.f32.xlu0 %v1574
          %v1576 = vpop.xlane.xlu0 %1575
          %v1577 = vsel %vm490, %v1571, 0.0
          %1578 = vadd.xlane.f32.xlu0 %v1577
          %v1579 = vpop.xlane.xlu0 %1578
          %v1580 = vld [vmem:[#allocation4] sm:$0xff]
          %v1581 = vld [vmem:[#allocation4 + $0x8] sm:$0xff]
          %v1582 = vld [vmem:[#allocation3] sm:$0xff]
          %v1583 = vld [vmem:[#allocation3 + $0x8] sm:$0xff]
          %1585 = vset.pattern.permute.xlu0 3
          %1586 = vperm.xlu0 %1585, %v1582
          %v1587 = vpop.permute.xlu0 %1586
          %1590 = vset.pattern.permute.xlu0 3
          %1591 = vperm.xlu0 %1590, %v1583
          %v1592 = vpop.permute.xlu0 %1591
          %v1594 = vrcp.pop %v1587
          %v1595 = vmul.f32 %v1580, %v1594
          %v1596 = vrcp.pop %v1592
          %v1597 = vmul.f32 %v1581, %v1596
          %v1598 = vrcp.pop %v1576
          %v1599 = vmul.f32 %v1562, %v1598
          %v1600 = vrcp.pop %v1579
          %v1601 = vmul.f32 %v1565, %v1600
          %1604 = vrot.lane.b32.xlu0 %v1599, 24
          %v1605 = vpop.permute.xlu0 %1604
          %1606 = vrot.lane.b32.xlu0 %v1601, 24
          %v1607 = vpop.permute.xlu0 %1606
          %v1610 = vmul.f32 %v1292, %v1605
          %v1611 = vmul.f32 %v1292, %v1607
          %v1612 = vmul.f32 %v1301, %v1595
          %v1613 = vmul.f32 %v1301, %v1597
          %v1614 = vadd.f32 %v1610, %v1612
          %v1615 = vadd.f32 %v1611, %v1613
          %1616 = vst.msk [vmem:[#allocation4] sm:$0xff] %vm1179, %v1614
          %1617 = vst.msk [vmem:[#allocation4 + $0x8] sm:$0xff] %vm1179, %v1615
          %v1618 = vld [vmem:[#allocation4] sm:$0xff]
          %v1619 = vld [vmem:[#allocation4 + $0x8] sm:$0xff]
          %v1620 = vpack.c.bf16 %v1619, %v1618
          %v1621 = vld [vmem:[%s5] sm:$0xf]
          %v1622 = vld [vmem:[%s5 + $0x4] sm:$0xf]
          %v1623 = vld [vmem:[%s5 + $0x8] sm:$0xf]
          %v1624 = vld [vmem:[%s5 + $0xc] sm:$0xf]
          %v1629 = vunpack.c.l.b16 %v1621
          %v1630 = vunpack.c.l.b16 %v1622
          %v1631 = vunpack.c.l.b16 %v1623
          %v1632 = vunpack.c.l.b16 %v1624
          %v1633 = vpack.c.b16 %v1630, %v1629
          %v1634 = vpack.c.b16 %v1632, %v1631
          %vm1637 = vcmask 261120
          %v1639 = vsel %vm1637, %v1620, 0
          %1641 = vmatprep.subr.bf16.mxu0 0
          %1642 = vmatpush1.bf16.msra.mxu0 %v1633
          %1643 = vmatprep.subr.bf16.mxu0 0
          %1644 = vmatpush1.bf16.msra.mxu0 %v1634
          %1645 = vmatprep.subr.bf16.mxu0 0
          %1646 = vmatpush1.bf16.msra.mxu0 0
          %1647 = vmatprep.subr.bf16.mxu0 0
          %1648 = vmatpush1.bf16.msra.mxu0 0
          %1649 = vmatprep.subr.bf16.mxu0 0
          %1650 = vmatpush1.bf16.msra.mxu0 0
          %1651 = vmatprep.subr.bf16.mxu0 0
          %1652 = vmatpush1.bf16.msra.mxu0 0
          %1653 = vmatprep.subr.bf16.mxu0 0
          %1654 = vmatpush1.bf16.msra.mxu0 0
          %1655 = vmatprep.subr.bf16.mxu0 0
          %1656 = vmatpush1.bf16.msra.mxu0 0
          %1657 = vmatprep.subr.bf16.mxu0 0
          %1658 = vmatpush1.bf16.msra.mxu0 0
          %1659 = vmatprep.subr.bf16.mxu0 0
          %1660 = vmatpush1.bf16.msra.mxu0 0
          %1661 = vmatprep.subr.bf16.mxu0 0
          %1662 = vmatpush1.bf16.msra.mxu0 0
          %1663 = vmatprep.subr.bf16.mxu0 0
          %1664 = vmatpush1.bf16.msra.mxu0 0
          %1665 = vmatprep.subr.bf16.mxu0 0
          %1666 = vmatpush1.bf16.msra.mxu0 0
          %1667 = vmatprep.subr.bf16.mxu0 0
          %1668 = vmatpush1.bf16.msra.mxu0 0
          %1669 = vmatprep.subr.bf16.mxu0 0
          %1670 = vmatpush1.bf16.msra.mxu0 0
          %1671 = vmatprep.subr.bf16.mxu0 0
          %1672 = vmatpush1.bf16.msra.mxu0 0
          %1673 = vmatprep.mubr.bf16.mxu0 0
          %1674 = vmatmul.mubr.bf16.gmra.mrb[0].mxu0 %v1639
          %v1675 = vpop.f32.mrb[0].mxu0
          %v1676 = vadd.f32 0.0, %v1675
          %v1677 = vpop.f32.mrb[0].mxu0
          %v1678 = vpop.f32.mrb[0].mxu0
          %v1679 = vadd.f32 0.0, %v1678
          %v1680 = vpop.f32.mrb[0].mxu0
          %1681 = vdwg.mxu0
          %1682 = vst.msk [vmem:[%s454] sm:$0xff] %vm1637, %v1676
          %1683 = vst.msk [vmem:[%s454 + $0x8] sm:$0xff] %vm1637, %v1679
        $region72: #{tpu_custom_call.1} parent=47 // pred_fallthru
          _
        %s1684 = sand.u32 %s237, 1
        %s1685 = scalar_lea.sflag [#allocation7], %s1684
        %s1686 = sand.u32 %s237, 1
        %s1687 = smul.addr %s1686, 16
        %s1688 = scalar_lea.vmem [#allocation13], %s1687
        // Predicated region
        $region73: #{tpu_custom_call.1} parent=47 // pred_check
          %p1689 = pneg %p247
        $region74: #{tpu_custom_call.1} parent=47 // pred_check_branch
          %1691 = sbr.rel (%p1689) target = $region76
        $region75: #{tpu_custom_call.1} parent=47 // pred_region
          %s1692 = smul.u32 2, %s36
          %s1694 = ssub.s32 256, 256
          %1695 = vsyncadd %s1685, %s1694
          %s1696 = smul.addr %s35, 4
          %s1697 = sadd.s32 %s1692, %s1696
          %s1698 = smul.addr %s1697, 128
          %s1699 = scalar_lea.hbm %s7, %s1698
          %s1700 = sshll.u32 %s1688, 4
          %s1701 = int_to_ptr.vmem [resolvable:$true] %s1700
          %1706 = dma.vmem_to_hbm [thread:$0]  %s1701, 256, %s1699, %s1685, 128, 128, 8
        $region76: #{tpu_custom_call.1} parent=47 // pred_fallthru
          _
      $region48: #{tpu_custom_call.1} parent=5 // pred_fallthru
        _
      %p1707 = scmp.le.s32.totalorder 2, %s25
      // Predicated region
      $region77: #{tpu_custom_call.1} parent=5 // pred_check
        %p1708 = pneg %p1707
      $region78: #{tpu_custom_call.1} parent=5 // pred_check_branch
        %1710 = sbr.rel (%p1708) target = $region80
      $region79: #{tpu_custom_call.1} parent=5 // pred_region
        %s1711 = ssub.s32 %s25, 2
        // Predicated region
        $region81: #{tpu_custom_call.1} parent=79 // pred_check
          %p1712 = pneg %p253
        $region82: #{tpu_custom_call.1} parent=79 // pred_check_branch
          %1714 = sbr.rel (%p1712) target = $region84
        $region83: #{tpu_custom_call.1} parent=79 // pred_region
          %s1715 = sand.u32 %s238, 1
          %s1716 = scalar_lea.sflag [#allocation7], %s1715
          %s1717 = sand.u32 %s238, 1
          %s1718 = smul.addr %s1717, 16
          %s1719 = scalar_lea.vmem [#allocation13], %s1718
          %1720 = dma.done %s1716, 256
        $region84: #{tpu_custom_call.1} parent=79 // pred_fallthru
          _
      $region80: #{tpu_custom_call.1} parent=5 // pred_fallthru
        _
    $region6: #{tpu_custom_call.1} parent=1 // loop_footer
      %s29 = sadd.s32 1, %s25
    $region7: #{tpu_custom_call.1} parent=1 // loop_footer_branch
      %24 = sbr.rel target = $region3
    $region8: #{tpu_custom_call.1} parent=1 // loop_exit
      _
    %1721 = vsyncpa [#allocation6], 1
    %s1722 = scalar_lea.sflag [#allocation6], 1
    %1723 = vsyncpa %s1722, 1
    %1724 = vsyncpa [#allocation9], 1
    %s1725 = scalar_lea.sflag [#allocation9], 1
    %1726 = vsyncpa %s1725, 1
    %1727 = vsyncpa [#allocation12], 1
    %s1728 = scalar_lea.sflag [#allocation12], 1
    %1729 = vsyncpa %s1728, 1
    %1730 = vsyncpa [#allocation7], 1
    %s1731 = scalar_lea.sflag [#allocation7], 1
    %1732 = vsyncpa %s1731, 1

</llo_original>
